<compile_context>
chip_gen: v6e
topology: v6e:2x2x1
jax: 0.10.0
libtpu: 0.0.40
codegen_flags: <defaults>
</compile_context>

<pallas_src>
import math
from functools import partial

import jax
import jax.numpy as jnp
from jax import lax
from jax.experimental import pallas as pl
from jax.experimental.pallas import tpu as pltpu


def _round_up(x, m):
    return (x + m - 1) // m * m


def _choose_batch_tile(B, max_batch_tile):
    """Lane-aligned batch tile; >= 2 tiles whenever possible (v7x megacore)."""
    if B <= 128:
        return B                                   # single full-batch block
    max_batch_tile = max(128, _round_up(int(max_batch_tile), 128))
    tile = _round_up(pl.cdiv(B, 2), 128)           # aim for at least 2 tiles
    return min(tile, max_batch_tile)


def _mlp_kernel(x_ref, w1_ref, b1_ref, w2_ref, b2_ref, w3_ref, b3_ref, o_ref):
    """One batch tile of the fused 3-layer MLP.

    x:  (bt, din)  native row-major batch tile
    w1: (h1, din)  b1: (h1, 1)
    w2: (h2, h1)   b2: (h2, 1)
    w3: (h2, 1)    b3: (1, 1) scalar in SMEM
    o:  (1, bt)    lane-dense value row
    """
    # Cast the activation tile in-kernel (x keeps its original dtype in HBM).
    x = x_ref[...].astype(w1_ref.dtype)

    # Layer 1 (MXU): contract last dims of w1 (h1,din) and x (bt,din) -> (h1, bt).
    # Feature-major result keeps batch on the 128-lane axis; f32 accumulation.
    h1 = lax.dot_general(w1_ref[...], x, (((1,), (1,)), ((), ())),
                         preferred_element_type=jnp.float32)
    h1 = jnp.maximum(h1 + b1_ref[...], 0.0)

    # Layer 2 (MXU) + bias + ReLU.
    h2 = jnp.dot(w2_ref[...], h1.astype(w2_ref.dtype),
                 preferred_element_type=jnp.float32)
    h2 = jnp.maximum(h2 + b2_ref[...], 0.0)

    # Layer 3 (h2 -> 1): VPU multiply + sublane reduction (keeps the N=1 matmul
    # off the MXU) -> already lane-dense (1, bt).  Output bias added in-kernel.
    w3 = w3_ref[...].astype(jnp.float32)                 # (h2, 1), lane-broadcast
    out = jnp.sum(h2 * w3, axis=0, keepdims=True)        # (1, bt)
    o_ref[...] = (out + b3_ref[0, 0]).astype(o_ref.dtype)


@partial(jax.jit, static_argnames=("max_batch_tile", "compute_dtype"))
def _forward_impl(x, w1, b1, w2, b2, w3, b3, *, max_batch_tile, compute_dtype):
    compute_dtype = jnp.dtype(compute_dtype)
    B, din = x.shape
    h1_dim = w1.shape[0]
    h2_dim = w2.shape[0]

    batch_tile = _choose_batch_tile(B, max_batch_tile)
    grid = (pl.cdiv(B, batch_tile),)

    # Weight casts / bias reshapes fuse with the pallas_call under jit.
    w1c = w1.astype(compute_dtype)
    w2c = w2.astype(compute_dtype)
    w3c = w3.astype(compute_dtype)
    b1f = b1.astype(jnp.float32)
    b2f = b2.astype(jnp.float32)
    b3s = jnp.reshape(b3, (1, 1)).astype(jnp.float32)

    in_specs = [
        pl.BlockSpec((batch_tile, din), lambda i: (i, 0)),        # x row slab
        pl.BlockSpec((h1_dim, din), lambda i: (0, 0)),            # w1 (resident)
        pl.BlockSpec((h1_dim, 1), lambda i: (0, 0)),              # b1
        pl.BlockSpec((h2_dim, h1_dim), lambda i: (0, 0)),         # w2 (resident)
        pl.BlockSpec((h2_dim, 1), lambda i: (0, 0)),              # b2
        pl.BlockSpec((h2_dim, 1), lambda i: (0, 0)),              # w3 column
        pl.BlockSpec(memory_space=pltpu.MemorySpace.SMEM),        # b3 scalar
    ]
    out_spec = pl.BlockSpec((1, batch_tile), lambda i: (0, i))    # lane-dense out

    w_itemsize = jnp.dtype(compute_dtype).itemsize
    cost = pl.CostEstimate(
        flops=2 * B * (din * h1_dim + h1_dim * h2_dim + h2_dim),
        transcendentals=0,
        bytes_accessed=(B * din * x.dtype.itemsize
                        + (h1_dim * din + h2_dim * h1_dim + h2_dim) * w_itemsize
                        + (h1_dim + h2_dim + 1) * 4
                        + B * 4),
    )

    outT = pl.pallas_call(
        _mlp_kernel,
        out_shape=jax.ShapeDtypeStruct((1, B), jnp.float32),
        grid_spec=pltpu.PrefetchScalarGridSpec(
            num_scalar_prefetch=0,
            grid=grid,
            in_specs=in_specs,
            out_specs=out_spec,
        ),
        compiler_params=pltpu.CompilerParams(
            # Batch tiles are independent -> shard across v7x's 2 TensorCores.
            dimension_semantics=("parallel",),
        ),
        cost_estimate=cost,
    )(x, w1c, b1f, w2c, b2f, w3c, b3s)

    # (1, B) -> (B, 1): same element order, fuses under jit.
    return outT.reshape(B, 1)


def value_function_forward(x, params, *, max_batch_tile=1024, compute_dtype=None):
    """x: (B, input_dim).  params in PyTorch layout:
    w1 (h1,din), w2 (h2,h1), w3 (h2,1), b1 (h1,1), b2 (h2,1), b3 ().
    Returns (B, 1) float32.
    """
    if compute_dtype is None:
        compute_dtype = params["w1"].dtype
    compute_dtype = str(jnp.dtype(compute_dtype))
    return _forward_impl(
        x, params["w1"], params["b1"], params["w2"], params["b2"],
        params["w3"], params["b3"],
        max_batch_tile=int(max_batch_tile), compute_dtype=compute_dtype)


def _xavier_uniform(key, fan_out, fan_in):
    # Matches torch.nn.init.xavier_uniform_ (gain=1) on a (out, in) weight.
    limit = math.sqrt(6.0 / (fan_in + fan_out))
    return jax.random.uniform(key, (fan_out, fan_in), jnp.float32, -limit, limit)


def init_value_function_params(key, input_dim, hidden_layers, dtype=jnp.float32):
    """Deterministic init mirroring ValueFunction.__init__ (PyTorch layout)."""
    h1, h2 = hidden_layers
    k1, k2, k3 = jax.random.split(key, 3)
    return {
        "w1": _xavier_uniform(k1, h1, input_dim).astype(dtype),
        "b1": jnp.zeros((h1, 1), jnp.float32),
        "w2": _xavier_uniform(k2, h2, h1).astype(dtype),
        "b2": jnp.zeros((h2, 1), jnp.float32),
        "w3": _xavier_uniform(k3, 1, h2).T.astype(dtype),   # stored (h2, 1)
        "b3": jnp.zeros((), jnp.float32),
    }


def value_function_reference(x, params):
    """Pure-JAX f32 reference."""
    h = jnp.maximum(x @ params["w1"].astype(jnp.float32).T + params["b1"].T, 0.0)
    h = jnp.maximum(h @ params["w2"].astype(jnp.float32).T + params["b2"].T, 0.0)
    return h @ params["w3"].astype(jnp.float32) + params["b3"]


if __name__ == "__main__":
    input_dim = 32
    hidden_layers = [256, 256]        # module default

    key = jax.random.PRNGKey(0)
    k_params, k_x = jax.random.split(key)
    params = init_value_function_params(k_params, input_dim, hidden_layers)

    # B=256: two 128-row tiles (both v7x TensorCores busy).
    # B=200: ragged tail block (masked stores). B=72: single sub-128 block.
    for batch in (256, 200, 72):
        x = jax.random.normal(jax.random.fold_in(k_x, batch),
                              (batch, input_dim), dtype=jnp.float32)
        ref = value_function_reference(x, params)

        # float32 end-to-end (tight correctness check).
        out = jax.block_until_ready(value_function_forward(x, params))
        assert out.shape == (batch, 1), out.shape
        assert jnp.allclose(out, ref, atol=1e-4, rtol=1e-4), f"f32 mismatch (B={batch})"

        # bf16 weights/activations with f32 accumulation.
        out_bf16 = jax.block_until_ready(
            value_function_forward(x, params, compute_dtype=jnp.bfloat16))
        assert out_bf16.shape == (batch, 1), out_bf16.shape
        assert jnp.allclose(out_bf16, ref, atol=5e-2, rtol=5e-2), f"bf16 mismatch (B={batch})"

    print("KERNEL_OK")
</pallas_src>

<mosaic_0001>
module attributes {stable_mosaic.version = 11 : i64} {
  func.func @_mlp_kernel(%arg0: i32, %arg1: memref<128x32xf32, #tpu.memory_space<vmem>>, %arg2: memref<256x32xf32, #tpu.memory_space<vmem>>, %arg3: memref<256x1xf32, #tpu.memory_space<vmem>>, %arg4: memref<256x256xf32, #tpu.memory_space<vmem>>, %arg5: memref<256x1xf32, #tpu.memory_space<vmem>>, %arg6: memref<256x1xf32, #tpu.memory_space<vmem>>, %arg7: memref<1x1xf32, #tpu.memory_space<smem>>, %arg8: memref<1x128xf32, #tpu.memory_space<vmem>>) attributes {dimension_semantics = [#tpu.dimension_semantics<parallel>], iteration_bounds = array<i64: 2>, scalar_prefetch = 0 : i64, scratch_operands = 0 : i64, tpu.core_type = #tpu.core_type<tc>, window_params = [{transform_indices = @transform_0, window_bounds = array<i64: 128, 32>}, {pipeline_mode = #tpu.pipeline_mode<synchronous>, transform_indices = @transform_1, window_bounds = array<i64: 256, 32>}, {pipeline_mode = #tpu.pipeline_mode<synchronous>, transform_indices = @transform_2, window_bounds = array<i64: 256, 1>}, {pipeline_mode = #tpu.pipeline_mode<synchronous>, transform_indices = @transform_3, window_bounds = array<i64: 256, 256>}, {pipeline_mode = #tpu.pipeline_mode<synchronous>, transform_indices = @transform_4, window_bounds = array<i64: 256, 1>}, {pipeline_mode = #tpu.pipeline_mode<synchronous>, transform_indices = @transform_5, window_bounds = array<i64: 256, 1>}, {transform_indices = @transform_6, window_bounds = array<i64: 1, 1>}, {transform_indices = @transform_7, window_bounds = array<i64: 1, 128>}]} {
    %c0 = arith.constant 0 : index
    %c0_0 = arith.constant 0 : index
    %0 = vector.load %arg1[%c0, %c0_0] : memref<128x32xf32, #tpu.memory_space<vmem>>, vector<128x32xf32>
    %c0_1 = arith.constant 0 : index
    %c0_2 = arith.constant 0 : index
    %1 = vector.load %arg2[%c0_1, %c0_2] : memref<256x32xf32, #tpu.memory_space<vmem>>, vector<256x32xf32>
    %cst = arith.constant dense<0.000000e+00> : vector<256x128xf32>
    %2 = tpu.matmul %1, %0, %cst {dimension_numbers = #tpu.dot_dimension_numbers<[1], [1], [0], [0], [0, 0, 1, 0], [], []>} : vector<256x32xf32>, vector<128x32xf32>, vector<256x128xf32> -> vector<256x128xf32>
    %c0_3 = arith.constant 0 : index
    %c0_4 = arith.constant 0 : index
    %3 = vector.load %arg3[%c0_3, %c0_4] : memref<256x1xf32, #tpu.memory_space<vmem>>, vector<256x1xf32>
    %4 = vector.broadcast %3 : vector<256x1xf32> to vector<256x128xf32>
    %5 = arith.addf %2, %4 : vector<256x128xf32>
    %cst_5 = arith.constant 0.000000e+00 : f32
    %6 = vector.broadcast %cst_5 : f32 to vector<256x128xf32>
    %7 = arith.maximumf %5, %6 : vector<256x128xf32>
    %c0_6 = arith.constant 0 : index
    %c0_7 = arith.constant 0 : index
    %8 = vector.load %arg4[%c0_6, %c0_7] : memref<256x256xf32, #tpu.memory_space<vmem>>, vector<256x256xf32>
    %cst_8 = arith.constant dense<0.000000e+00> : vector<256x128xf32>
    %9 = tpu.matmul %8, %7, %cst_8 {dimension_numbers = #tpu.dot_dimension_numbers<[1], [0], [0], [1], [0, 0, 1, 1], [], []>} : vector<256x256xf32>, vector<256x128xf32>, vector<256x128xf32> -> vector<256x128xf32>
    %c0_9 = arith.constant 0 : index
    %c0_10 = arith.constant 0 : index
    %10 = vector.load %arg5[%c0_9, %c0_10] : memref<256x1xf32, #tpu.memory_space<vmem>>, vector<256x1xf32>
    %11 = vector.broadcast %10 : vector<256x1xf32> to vector<256x128xf32>
    %12 = arith.addf %9, %11 : vector<256x128xf32>
    %cst_11 = arith.constant 0.000000e+00 : f32
    %13 = vector.broadcast %cst_11 : f32 to vector<256x128xf32>
    %14 = arith.maximumf %12, %13 : vector<256x128xf32>
    %c0_12 = arith.constant 0 : index
    %c0_13 = arith.constant 0 : index
    %15 = vector.load %arg6[%c0_12, %c0_13] : memref<256x1xf32, #tpu.memory_space<vmem>>, vector<256x1xf32>
    %16 = vector.broadcast %15 : vector<256x1xf32> to vector<256x128xf32>
    %17 = arith.mulf %14, %16 : vector<256x128xf32>
    %cst_14 = arith.constant dense<0.000000e+00> : vector<128xf32>
    %18 = vector.multi_reduction <add>, %17, %cst_14 [0] : vector<256x128xf32> to vector<128xf32>
    %19 = vector.shape_cast %18 : vector<128xf32> to vector<1x128xf32>
    %c0_15 = arith.constant 0 : index
    %c0_16 = arith.constant 0 : index
    %20 = memref.load %arg7[%c0_15, %c0_16] : memref<1x1xf32, #tpu.memory_space<smem>>
    %21 = vector.broadcast %20 : f32 to vector<1x128xf32>
    %22 = arith.addf %19, %21 : vector<1x128xf32>
    %c0_17 = arith.constant 0 : index
    %c0_18 = arith.constant 0 : index
    %23 = vector.load %arg8[%c0_17, %c0_18] : memref<1x128xf32, #tpu.memory_space<vmem>>, vector<1x128xf32>
    tpu.vector_store %arg8[%c0_17, %c0_18], %22 {strides = array<i32>} : memref<1x128xf32, #tpu.memory_space<vmem>>, vector<1x128xf32>,
    return
  }
  func.func @transform_0(%arg0: i32) -> (i32, i32) {
    %c0_i32 = arith.constant 0 : i32
    %c0_i32_0 = arith.constant 0 : i32
    return %arg0, %c0_i32 : i32, i32
  }
  func.func @transform_1(%arg0: i32) -> (i32, i32) {
    %c0_i32 = arith.constant 0 : i32
    %c0_i32_0 = arith.constant 0 : i32
    %c0_i32_1 = arith.constant 0 : i32
    return %c0_i32, %c0_i32_0 : i32, i32
  }
  func.func @transform_2(%arg0: i32) -> (i32, i32) {
    %c0_i32 = arith.constant 0 : i32
    %c0_i32_0 = arith.constant 0 : i32
    %c0_i32_1 = arith.constant 0 : i32
    return %c0_i32, %c0_i32_0 : i32, i32
  }
  func.func @transform_3(%arg0: i32) -> (i32, i32) {
    %c0_i32 = arith.constant 0 : i32
    %c0_i32_0 = arith.constant 0 : i32
    %c0_i32_1 = arith.constant 0 : i32
    return %c0_i32, %c0_i32_0 : i32, i32
  }
  func.func @transform_4(%arg0: i32) -> (i32, i32) {
    %c0_i32 = arith.constant 0 : i32
    %c0_i32_0 = arith.constant 0 : i32
    %c0_i32_1 = arith.constant 0 : i32
    return %c0_i32, %c0_i32_0 : i32, i32
  }
  func.func @transform_5(%arg0: i32) -> (i32, i32) {
    %c0_i32 = arith.constant 0 : i32
    %c0_i32_0 = arith.constant 0 : i32
    %c0_i32_1 = arith.constant 0 : i32
    return %c0_i32, %c0_i32_0 : i32, i32
  }
  func.func @transform_6(%arg0: i32) -> (i32, i32) {
    %c0_i32 = arith.constant 0 : i32
    %c0_i32_0 = arith.constant 0 : i32
    %c0_i32_1 = arith.constant 0 : i32
    return %c0_i32, %c0_i32_0 : i32, i32
  }
  func.func @transform_7(%arg0: i32) -> (i32, i32) {
    %c0_i32 = arith.constant 0 : i32
    %c0_i32_0 = arith.constant 0 : i32
    return %c0_i32, %arg0 : i32, i32
  }
}

</mosaic_0001>

<llo_original>
// kernel: _forward_impl.1
$region0: #{_forward_impl.1}
  #allocation0 [shape = 'u32[]', space=smem, size = 0x4, offset = 0x4, fixed_abs, tag = 'smem constant byte address 0x4 - core index']
  #allocation1 [shape = 'u32[144,128]{1,0:T(1,128)}', space=vmem, size = 0x12000, scoped, tag = 'internal scratch']
  #allocation2 [shape = 'f32[1,1]{1,0:T(1,128)S(6)}', space=smem, size = 0x200, scoped, tag = 'scoped memory for _forward_impl.1']
  %s0 = inlined_call_operand.vmem [shape: f32[256,32], index: 0, kind: input, shape index: {}]
  %s1 = inlined_call_operand.vmem [shape: f32[256,32], index: 1, kind: input, shape index: {}]
  %s2 = inlined_call_operand.vmem [shape: f32[256,1], index: 2, kind: input, shape index: {}]
  %s3 = inlined_call_operand.vmem [shape: f32[256,256], index: 3, kind: input, shape index: {}]
  %s4 = inlined_call_operand.vmem [shape: f32[256,1], index: 4, kind: input, shape index: {}]
  %s5 = inlined_call_operand.vmem [shape: f32[256,1], index: 5, kind: input, shape index: {}]
  %s6 = inlined_call_operand.<no memory space> [shape: f32[1,1], index: 6, kind: input, shape index: {}]
  %s7 = inlined_call_operand.hbm [shape: f32[1,256], index: 7, kind: output, shape index: {}]
  %s8 = sld [smem:[#allocation0]]
  $region61: #{_forward_impl.1} parent=0
    _
  %s10 = ssub.s32 1, %s8
  %s11 = scalar_select 0, %s10, %s8
  %12 = sst [smem:[#allocation2]] %s6
  $region1: #{_forward_impl.1} parent=0
    #allocation3 [shape = 'u8[1024]{0}', space=vmem, size = 0x400, scoped, tag = 'output window, operand 0']
    #allocation4 [shape = 's32[2]{0}', space=sflag, size = 0x8, scoped, tag = 'scoped memory for _forward_impl.1']
    %13 = vsyncpa [#allocation4], 0
    %s14 = scalar_lea.sflag [#allocation4], 1
    %15 = vsyncpa %s14, 0
    loop: start=0, step=1, limit=4
    $region2: #{_forward_impl.1} parent=1 // loop_pre_header
      _
    $region3: #{_forward_impl.1} parent=1 // loop_header
      %s17 = sphi 0, %s21
      %p18 = scmp.ge.s32.totalorder %s17, 4
      %s27 = sphi 0, %s29
      %s30 = sphi 0, %s27
      %s31 = sphi 0, %s30
      %s47 = sphi 0, %s31
      %s51 = sphi 0, %s51
      %s53 = sphi 0, %s51
      %s54 = sphi 0, %s53
      %s68 = sphi 0, %s54
      %s72 = sphi 0, %s72
      %s74 = sphi 0, %s72
      %s75 = sphi 0, %s74
      %s89 = sphi 0, %s75
      %s93 = sphi 0, %s93
      %s95 = sphi 0, %s93
      %s96 = sphi 0, %s95
      %s110 = sphi 0, %s96
      %s114 = sphi 0, %s114
      %s116 = sphi 0, %s114
      %s117 = sphi 0, %s116
      %s131 = sphi 0, %s117
      %s135 = sphi 0, %s135
      %s137 = sphi 0, %s135
      %s138 = sphi 0, %s137
      %s152 = sphi 0, %s138
      %s156 = sphi 0, %s156
      %s158 = sphi 0, %s156
      %s159 = sphi 0, %s158
      %s173 = sphi 0, %s159
      %s179 = sphi 0, %s181
      %s182 = sphi 0, %s179
      %s183 = sphi 0, %s182
      %s199 = sphi 0, %s183
    $region4: #{_forward_impl.1} parent=1 // loop_header_branch
      %20 = sbr.rel (%p18) target = $region8
    $region5: #{_forward_impl.1} parent=1 // loop_body
      %s22 = ssub.s32 %s17, 1
      %s23 = ssub.s32 %s17, 2
      %s24 = sadd.s32 %s17, 1
      %s25 = ssub.s32 %s17, %s24
      %p26 = scmp.eq.s32.totalorder %s25, 0
      %s28 = sadd.s32 %s27, 1
      %s29 = scalar_select %p26, %s27, %s28
      %p32 = pneg %p26
      %p33 = scmp.eq.s32.totalorder %s17, 1
      %p34 = por %p32, %p33
      %p35 = scmp.ne.s32.totalorder %s27, %s30
      %p36 = scmp.eq.s32.totalorder %s17, 0
      %p37 = por %p35, %p36
      %p38 = scmp.ne.s32.totalorder %s27, %s30
      %p39 = scmp.eq.s32.totalorder %s22, 1
      %p40 = por %p38, %p39
      %p41 = scmp.ne.s32.totalorder %s30, %s31
      %p42 = scmp.eq.s32.totalorder %s22, 0
      %p43 = por %p41, %p42
      %p44 = scmp.ne.s32.totalorder %s30, %s31
      %p45 = scmp.eq.s32.totalorder %s23, 1
      %p46 = por %p44, %p45
      %p48 = scmp.ne.s32.totalorder %s31, %s47
      %p49 = scmp.eq.s32.totalorder %s23, 0
      %p50 = por %p48, %p49
      %s52 = sadd.s32 %s51, 1
      %p55 = scmp.eq.s32.totalorder %s17, 1
      %p56 = scmp.ne.s32.totalorder %s51, %s53
      %p57 = scmp.eq.s32.totalorder %s17, 0
      %p58 = por %p56, %p57
      %p59 = scmp.ne.s32.totalorder %s51, %s53
      %p60 = scmp.eq.s32.totalorder %s22, 1
      %p61 = por %p59, %p60
      %p62 = scmp.ne.s32.totalorder %s53, %s54
      %p63 = scmp.eq.s32.totalorder %s22, 0
      %p64 = por %p62, %p63
      %p65 = scmp.ne.s32.totalorder %s53, %s54
      %p66 = scmp.eq.s32.totalorder %s23, 1
      %p67 = por %p65, %p66
      %p69 = scmp.ne.s32.totalorder %s54, %s68
      %p70 = scmp.eq.s32.totalorder %s23, 0
      %p71 = por %p69, %p70
      %s73 = sadd.s32 %s72, 1
      %p76 = scmp.eq.s32.totalorder %s17, 1
      %p77 = scmp.ne.s32.totalorder %s72, %s74
      %p78 = scmp.eq.s32.totalorder %s17, 0
      %p79 = por %p77, %p78
      %p80 = scmp.ne.s32.totalorder %s72, %s74
      %p81 = scmp.eq.s32.totalorder %s22, 1
      %p82 = por %p80, %p81
      %p83 = scmp.ne.s32.totalorder %s74, %s75
      %p84 = scmp.eq.s32.totalorder %s22, 0
      %p85 = por %p83, %p84
      %p86 = scmp.ne.s32.totalorder %s74, %s75
      %p87 = scmp.eq.s32.totalorder %s23, 1
      %p88 = por %p86, %p87
      %p90 = scmp.ne.s32.totalorder %s75, %s89
      %p91 = scmp.eq.s32.totalorder %s23, 0
      %p92 = por %p90, %p91
      %s94 = sadd.s32 %s93, 1
      %p97 = scmp.eq.s32.totalorder %s17, 1
      %p98 = scmp.ne.s32.totalorder %s93, %s95
      %p99 = scmp.eq.s32.totalorder %s17, 0
      %p100 = por %p98, %p99
      %p101 = scmp.ne.s32.totalorder %s93, %s95
      %p102 = scmp.eq.s32.totalorder %s22, 1
      %p103 = por %p101, %p102
      %p104 = scmp.ne.s32.totalorder %s95, %s96
      %p105 = scmp.eq.s32.totalorder %s22, 0
      %p106 = por %p104, %p105
      %p107 = scmp.ne.s32.totalorder %s95, %s96
      %p108 = scmp.eq.s32.totalorder %s23, 1
      %p109 = por %p107, %p108
      %p111 = scmp.ne.s32.totalorder %s96, %s110
      %p112 = scmp.eq.s32.totalorder %s23, 0
      %p113 = por %p111, %p112
      %s115 = sadd.s32 %s114, 1
      %p118 = scmp.eq.s32.totalorder %s17, 1
      %p119 = scmp.ne.s32.totalorder %s114, %s116
      %p120 = scmp.eq.s32.totalorder %s17, 0
      %p121 = por %p119, %p120
      %p122 = scmp.ne.s32.totalorder %s114, %s116
      %p123 = scmp.eq.s32.totalorder %s22, 1
      %p124 = por %p122, %p123
      %p125 = scmp.ne.s32.totalorder %s116, %s117
      %p126 = scmp.eq.s32.totalorder %s22, 0
      %p127 = por %p125, %p126
      %p128 = scmp.ne.s32.totalorder %s116, %s117
      %p129 = scmp.eq.s32.totalorder %s23, 1
      %p130 = por %p128, %p129
      %p132 = scmp.ne.s32.totalorder %s117, %s131
      %p133 = scmp.eq.s32.totalorder %s23, 0
      %p134 = por %p132, %p133
      %s136 = sadd.s32 %s135, 1
      %p139 = scmp.eq.s32.totalorder %s17, 1
      %p140 = scmp.ne.s32.totalorder %s135, %s137
      %p141 = scmp.eq.s32.totalorder %s17, 0
      %p142 = por %p140, %p141
      %p143 = scmp.ne.s32.totalorder %s135, %s137
      %p144 = scmp.eq.s32.totalorder %s22, 1
      %p145 = por %p143, %p144
      %p146 = scmp.ne.s32.totalorder %s137, %s138
      %p147 = scmp.eq.s32.totalorder %s22, 0
      %p148 = por %p146, %p147
      %p149 = scmp.ne.s32.totalorder %s137, %s138
      %p150 = scmp.eq.s32.totalorder %s23, 1
      %p151 = por %p149, %p150
      %p153 = scmp.ne.s32.totalorder %s138, %s152
      %p154 = scmp.eq.s32.totalorder %s23, 0
      %p155 = por %p153, %p154
      %s157 = sadd.s32 %s156, 1
      %p160 = scmp.eq.s32.totalorder %s17, 1
      %p161 = scmp.ne.s32.totalorder %s156, %s158
      %p162 = scmp.eq.s32.totalorder %s17, 0
      %p163 = por %p161, %p162
      %p164 = scmp.ne.s32.totalorder %s156, %s158
      %p165 = scmp.eq.s32.totalorder %s22, 1
      %p166 = por %p164, %p165
      %p167 = scmp.ne.s32.totalorder %s158, %s159
      %p168 = scmp.eq.s32.totalorder %s22, 0
      %p169 = por %p167, %p168
      %p170 = scmp.ne.s32.totalorder %s158, %s159
      %p171 = scmp.eq.s32.totalorder %s23, 1
      %p172 = por %p170, %p171
      %p174 = scmp.ne.s32.totalorder %s159, %s173
      %p175 = scmp.eq.s32.totalorder %s23, 0
      %p176 = por %p174, %p175
      %s177 = ssub.s32 %s17, %s24
      %p178 = scmp.eq.s32.totalorder %s177, 0
      %s180 = sadd.s32 %s179, 1
      %s181 = scalar_select %p178, %s179, %s180
      %p184 = pneg %p178
      %p185 = scmp.eq.s32.totalorder %s17, 1
      %p186 = por %p184, %p185
      %p187 = scmp.ne.s32.totalorder %s179, %s182
      %p188 = scmp.eq.s32.totalorder %s17, 0
      %p189 = por %p187, %p188
      %p190 = scmp.ne.s32.totalorder %s179, %s182
      %p191 = scmp.eq.s32.totalorder %s22, 1
      %p192 = por %p190, %p191
      %p193 = scmp.ne.s32.totalorder %s182, %s183
      %p194 = scmp.eq.s32.totalorder %s22, 0
      %p195 = por %p193, %p194
      %p196 = scmp.ne.s32.totalorder %s182, %s183
      %p197 = scmp.eq.s32.totalorder %s23, 1
      %p198 = por %p196, %p197
      %p200 = scmp.ne.s32.totalorder %s183, %s199
      %p201 = scmp.eq.s32.totalorder %s23, 0
      %p202 = por %p200, %p201
      %p203 = scmp.le.s32.totalorder 1, %s17
      %p204 = scmp.lt.s32.totalorder %s17, 3
      %p205 = pnand %p203, %p204
      %p206 = pneg %p205
      // Predicated region
      $region9: #{_forward_impl.1} parent=5 // pred_check
        _
      $region10: #{_forward_impl.1} parent=5 // pred_check_branch
        %208 = sbr.rel (%p205) target = $region12
      $region11: #{_forward_impl.1} parent=5 // pred_region
        %s209 = ssub.s32 %s17, 1
        // Predicated region
        $region13: #{_forward_impl.1} parent=11 // pred_check
          %p210 = pneg %p64
        $region14: #{_forward_impl.1} parent=11 // pred_check_branch
          %212 = sbr.rel (%p210) target = $region16
        $region15: #{_forward_impl.1} parent=11 // pred_region
          _
        $region16: #{_forward_impl.1} parent=11 // pred_fallthru
          _
        // Predicated region
        $region17: #{_forward_impl.1} parent=11 // pred_check
          %p213 = pneg %p85
        $region18: #{_forward_impl.1} parent=11 // pred_check_branch
          %215 = sbr.rel (%p213) target = $region20
        $region19: #{_forward_impl.1} parent=11 // pred_region
          _
        $region20: #{_forward_impl.1} parent=11 // pred_fallthru
          _
        // Predicated region
        $region21: #{_forward_impl.1} parent=11 // pred_check
          %p216 = pneg %p106
        $region22: #{_forward_impl.1} parent=11 // pred_check_branch
          %218 = sbr.rel (%p216) target = $region24
        $region23: #{_forward_impl.1} parent=11 // pred_region
          _
        $region24: #{_forward_impl.1} parent=11 // pred_fallthru
          _
        // Predicated region
        $region25: #{_forward_impl.1} parent=11 // pred_check
          %p219 = pneg %p127
        $region26: #{_forward_impl.1} parent=11 // pred_check_branch
          %221 = sbr.rel (%p219) target = $region28
        $region27: #{_forward_impl.1} parent=11 // pred_region
          _
        $region28: #{_forward_impl.1} parent=11 // pred_fallthru
          _
        // Predicated region
        $region29: #{_forward_impl.1} parent=11 // pred_check
          %p222 = pneg %p148
        $region30: #{_forward_impl.1} parent=11 // pred_check_branch
          %224 = sbr.rel (%p222) target = $region32
        $region31: #{_forward_impl.1} parent=11 // pred_region
          _
        $region32: #{_forward_impl.1} parent=11 // pred_fallthru
          _
        // Predicated region
        $region33: #{_forward_impl.1} parent=11 // pred_check
          %p225 = pneg %p169
        $region34: #{_forward_impl.1} parent=11 // pred_check_branch
          %227 = sbr.rel (%p225) target = $region36
        $region35: #{_forward_impl.1} parent=11 // pred_region
          _
        $region36: #{_forward_impl.1} parent=11 // pred_fallthru
          _
      $region12: #{_forward_impl.1} parent=5 // pred_fallthru
        _
      %p228 = scmp.lt.s32.totalorder %s17, 2
      // Predicated region
      $region37: #{_forward_impl.1} parent=5 // pred_check
        %p229 = pneg %p228
      $region38: #{_forward_impl.1} parent=5 // pred_check_branch
        %231 = sbr.rel (%p229) target = $region40
      $region39: #{_forward_impl.1} parent=5 // pred_region
        // Predicated region
        $region41: #{_forward_impl.1} parent=39 // pred_check
          %p232 = pneg %p37
        $region42: #{_forward_impl.1} parent=39 // pred_check_branch
          %234 = sbr.rel (%p232) target = $region44
        $region43: #{_forward_impl.1} parent=39 // pred_region
          %s235 = smul.u32 16, %s17
          %p236 = scmp.lt.s32.totalorder %s235, 31
          %s237 = scalar_select %p236, %s235, 31
          %s238 = smul.addr %s237, 8
          %s239 = scalar_lea.vmem %s0, %s238
          %s240 = smul.u32 16, %s17
        $region44: #{_forward_impl.1} parent=39 // pred_fallthru
          _
      $region40: #{_forward_impl.1} parent=5 // pred_fallthru
        _
      %p241 = scmp.le.s32.totalorder 1, %s17
      %p242 = scmp.lt.s32.totalorder %s17, 3
      %p243 = pnand %p241, %p242
      %p244 = pneg %p243
      // Predicated region
      $region45: #{_forward_impl.1} parent=5 // pred_check
        _
      $region46: #{_forward_impl.1} parent=5 // pred_check_branch
        %246 = sbr.rel (%p243) target = $region48
      $region47: #{_forward_impl.1} parent=5 // pred_region
        %s247 = ssub.s32 %s17, 1
        %s248 = smul.u32 16, %s22
        %p249 = scmp.lt.s32.totalorder %s248, 31
        %s250 = scalar_select %p249, %s248, 31
        %s251 = smul.addr %s250, 8
        %s252 = scalar_lea.vmem %s0, %s251
        %p253 = pneg %p43
        %p254 = pneg %p40
        %p255 = pneg %p64
        %p256 = pneg %p61
        %p257 = pneg %p85
        %p258 = pneg %p82
        %p259 = pneg %p106
        %p260 = pneg %p103
        %p261 = pneg %p127
        %p262 = pneg %p124
        %p263 = pneg %p148
        %p264 = pneg %p145
        %p265 = pneg %p169
        %p266 = pneg %p166
        %p267 = pneg %p195
        %p268 = pneg %p192
        %s269 = sand.u32 %s182, 1
        %s270 = scalar_lea.sflag [#allocation4], %s269
        %s271 = sand.u32 %s182, 1
        %s272 = scalar_lea.vmem [#allocation3], %s271
        %s273 = smul.u32 16, %s22
        %p274 = scmp.lt.s32.totalorder %s273, 31
        %s275 = scalar_select %p274, %s273, 31
        %s276 = smul.addr %s275, 8
        %s277 = scalar_lea.vmem %s0, %s276
        %s278 = smul.u32 16, %s22
        %v279 = vld [vmem:[%s277] sm:$0xff]
        %v280 = vld [vmem:[%s277 + $0x8] sm:$0xff]
        %v281 = vld [vmem:[%s277 + $0x10] sm:$0xff]
        %v282 = vld [vmem:[%s277 + $0x18] sm:$0xff]
        %v283 = vld [vmem:[%s277 + $0x20] sm:$0xff]
        %v284 = vld [vmem:[%s277 + $0x28] sm:$0xff]
        %v285 = vld [vmem:[%s277 + $0x30] sm:$0xff]
        %v286 = vld [vmem:[%s277 + $0x38] sm:$0xff]
        %v287 = vld [vmem:[%s277 + $0x40] sm:$0xff]
        %v288 = vld [vmem:[%s277 + $0x48] sm:$0xff]
        %v289 = vld [vmem:[%s277 + $0x50] sm:$0xff]
        %v290 = vld [vmem:[%s277 + $0x58] sm:$0xff]
        %v291 = vld [vmem:[%s277 + $0x60] sm:$0xff]
        %v292 = vld [vmem:[%s277 + $0x68] sm:$0xff]
        %v293 = vld [vmem:[%s277 + $0x70] sm:$0xff]
        %v294 = vld [vmem:[%s277 + $0x78] sm:$0xff]
        %v295 = vld [vmem:[%s1] sm:$0xff]
        %v296 = vld [vmem:[%s1 + $0x8] sm:$0xff]
        %v297 = vld [vmem:[%s1 + $0x10] sm:$0xff]
        %v298 = vld [vmem:[%s1 + $0x18] sm:$0xff]
        %v299 = vld [vmem:[%s1 + $0x20] sm:$0xff]
        %v300 = vld [vmem:[%s1 + $0x28] sm:$0xff]
        %v301 = vld [vmem:[%s1 + $0x30] sm:$0xff]
        %v302 = vld [vmem:[%s1 + $0x38] sm:$0xff]
        %v303 = vld [vmem:[%s1 + $0x40] sm:$0xff]
        %v304 = vld [vmem:[%s1 + $0x48] sm:$0xff]
        %v305 = vld [vmem:[%s1 + $0x50] sm:$0xff]
        %v306 = vld [vmem:[%s1 + $0x58] sm:$0xff]
        %v307 = vld [vmem:[%s1 + $0x60] sm:$0xff]
        %v308 = vld [vmem:[%s1 + $0x68] sm:$0xff]
        %v309 = vld [vmem:[%s1 + $0x70] sm:$0xff]
        %v310 = vld [vmem:[%s1 + $0x78] sm:$0xff]
        %v311 = vld [vmem:[%s1 + $0x80] sm:$0xff]
        %v312 = vld [vmem:[%s1 + $0x88] sm:$0xff]
        %v313 = vld [vmem:[%s1 + $0x90] sm:$0xff]
        %v314 = vld [vmem:[%s1 + $0x98] sm:$0xff]
        %v315 = vld [vmem:[%s1 + $0xa0] sm:$0xff]
        %v316 = vld [vmem:[%s1 + $0xa8] sm:$0xff]
        %v317 = vld [vmem:[%s1 + $0xb0] sm:$0xff]
        %v318 = vld [vmem:[%s1 + $0xb8] sm:$0xff]
        %v319 = vld [vmem:[%s1 + $0xc0] sm:$0xff]
        %v320 = vld [vmem:[%s1 + $0xc8] sm:$0xff]
        %v321 = vld [vmem:[%s1 + $0xd0] sm:$0xff]
        %v322 = vld [vmem:[%s1 + $0xd8] sm:$0xff]
        %v323 = vld [vmem:[%s1 + $0xe0] sm:$0xff]
        %v324 = vld [vmem:[%s1 + $0xe8] sm:$0xff]
        %v325 = vld [vmem:[%s1 + $0xf0] sm:$0xff]
        %v326 = vld [vmem:[%s1 + $0xf8] sm:$0xff]
        %v327 = vld [vmem:[%s2] sm:$0xff]
        %v328 = vld [vmem:[%s2 + $0x8] sm:$0xff]
        %v329 = vld [vmem:[%s2 + $0x10] sm:$0xff]
        %v330 = vld [vmem:[%s2 + $0x18] sm:$0xff]
        %v331 = vld [vmem:[%s2 + $0x20] sm:$0xff]
        %v332 = vld [vmem:[%s2 + $0x28] sm:$0xff]
        %v333 = vld [vmem:[%s2 + $0x30] sm:$0xff]
        %v334 = vld [vmem:[%s2 + $0x38] sm:$0xff]
        %v335 = vld [vmem:[%s2 + $0x40] sm:$0xff]
        %v336 = vld [vmem:[%s2 + $0x48] sm:$0xff]
        %v337 = vld [vmem:[%s2 + $0x50] sm:$0xff]
        %v338 = vld [vmem:[%s2 + $0x58] sm:$0xff]
        %v339 = vld [vmem:[%s2 + $0x60] sm:$0xff]
        %v340 = vld [vmem:[%s2 + $0x68] sm:$0xff]
        %v341 = vld [vmem:[%s2 + $0x70] sm:$0xff]
        %v342 = vld [vmem:[%s2 + $0x78] sm:$0xff]
        %v343 = vld [vmem:[%s2 + $0x80] sm:$0xff]
        %v344 = vld [vmem:[%s2 + $0x88] sm:$0xff]
        %v345 = vld [vmem:[%s2 + $0x90] sm:$0xff]
        %v346 = vld [vmem:[%s2 + $0x98] sm:$0xff]
        %v347 = vld [vmem:[%s2 + $0xa0] sm:$0xff]
        %v348 = vld [vmem:[%s2 + $0xa8] sm:$0xff]
        %v349 = vld [vmem:[%s2 + $0xb0] sm:$0xff]
        %v350 = vld [vmem:[%s2 + $0xb8] sm:$0xff]
        %v351 = vld [vmem:[%s2 + $0xc0] sm:$0xff]
        %v352 = vld [vmem:[%s2 + $0xc8] sm:$0xff]
        %v353 = vld [vmem:[%s2 + $0xd0] sm:$0xff]
        %v354 = vld [vmem:[%s2 + $0xd8] sm:$0xff]
        %v355 = vld [vmem:[%s2 + $0xe0] sm:$0xff]
        %v356 = vld [vmem:[%s2 + $0xe8] sm:$0xff]
        %v357 = vld [vmem:[%s2 + $0xf0] sm:$0xff]
        %v358 = vld [vmem:[%s2 + $0xf8] sm:$0xff]
        %360 = vset.pattern.permute.xlu0 0
        %361 = vperm.xlu0 %360, %v327
        %v362 = vpop.permute.xlu0 %361
        %365 = vset.pattern.permute.xlu0 0
        %366 = vperm.xlu0 %365, %v328
        %v367 = vpop.permute.xlu0 %366
        %370 = vset.pattern.permute.xlu0 0
        %371 = vperm.xlu0 %370, %v329
        %v372 = vpop.permute.xlu0 %371
        %375 = vset.pattern.permute.xlu0 0
        %376 = vperm.xlu0 %375, %v330
        %v377 = vpop.permute.xlu0 %376
        %380 = vset.pattern.permute.xlu0 0
        %381 = vperm.xlu0 %380, %v331
        %v382 = vpop.permute.xlu0 %381
        %385 = vset.pattern.permute.xlu0 0
        %386 = vperm.xlu0 %385, %v332
        %v387 = vpop.permute.xlu0 %386
        %390 = vset.pattern.permute.xlu0 0
        %391 = vperm.xlu0 %390, %v333
        %v392 = vpop.permute.xlu0 %391
        %395 = vset.pattern.permute.xlu0 0
        %396 = vperm.xlu0 %395, %v334
        %v397 = vpop.permute.xlu0 %396
        %400 = vset.pattern.permute.xlu0 0
        %401 = vperm.xlu0 %400, %v335
        %v402 = vpop.permute.xlu0 %401
        %405 = vset.pattern.permute.xlu0 0
        %406 = vperm.xlu0 %405, %v336
        %v407 = vpop.permute.xlu0 %406
        %410 = vset.pattern.permute.xlu0 0
        %411 = vperm.xlu0 %410, %v337
        %v412 = vpop.permute.xlu0 %411
        %415 = vset.pattern.permute.xlu0 0
        %416 = vperm.xlu0 %415, %v338
        %v417 = vpop.permute.xlu0 %416
        %420 = vset.pattern.permute.xlu0 0
        %421 = vperm.xlu0 %420, %v339
        %v422 = vpop.permute.xlu0 %421
        %425 = vset.pattern.permute.xlu0 0
        %426 = vperm.xlu0 %425, %v340
        %v427 = vpop.permute.xlu0 %426
        %430 = vset.pattern.permute.xlu0 0
        %431 = vperm.xlu0 %430, %v341
        %v432 = vpop.permute.xlu0 %431
        %435 = vset.pattern.permute.xlu0 0
        %436 = vperm.xlu0 %435, %v342
        %v437 = vpop.permute.xlu0 %436
        %440 = vset.pattern.permute.xlu0 0
        %441 = vperm.xlu0 %440, %v343
        %v442 = vpop.permute.xlu0 %441
        %445 = vset.pattern.permute.xlu0 0
        %446 = vperm.xlu0 %445, %v344
        %v447 = vpop.permute.xlu0 %446
        %450 = vset.pattern.permute.xlu0 0
        %451 = vperm.xlu0 %450, %v345
        %v452 = vpop.permute.xlu0 %451
        %455 = vset.pattern.permute.xlu0 0
        %456 = vperm.xlu0 %455, %v346
        %v457 = vpop.permute.xlu0 %456
        %460 = vset.pattern.permute.xlu0 0
        %461 = vperm.xlu0 %460, %v347
        %v462 = vpop.permute.xlu0 %461
        %465 = vset.pattern.permute.xlu0 0
        %466 = vperm.xlu0 %465, %v348
        %v467 = vpop.permute.xlu0 %466
        %470 = vset.pattern.permute.xlu0 0
        %471 = vperm.xlu0 %470, %v349
        %v472 = vpop.permute.xlu0 %471
        %475 = vset.pattern.permute.xlu0 0
        %476 = vperm.xlu0 %475, %v350
        %v477 = vpop.permute.xlu0 %476
        %480 = vset.pattern.permute.xlu0 0
        %481 = vperm.xlu0 %480, %v351
        %v482 = vpop.permute.xlu0 %481
        %485 = vset.pattern.permute.xlu0 0
        %486 = vperm.xlu0 %485, %v352
        %v487 = vpop.permute.xlu0 %486
        %490 = vset.pattern.permute.xlu0 0
        %491 = vperm.xlu0 %490, %v353
        %v492 = vpop.permute.xlu0 %491
        %495 = vset.pattern.permute.xlu0 0
        %496 = vperm.xlu0 %495, %v354
        %v497 = vpop.permute.xlu0 %496
        %500 = vset.pattern.permute.xlu0 0
        %501 = vperm.xlu0 %500, %v355
        %v502 = vpop.permute.xlu0 %501
        %505 = vset.pattern.permute.xlu0 0
        %506 = vperm.xlu0 %505, %v356
        %v507 = vpop.permute.xlu0 %506
        %510 = vset.pattern.permute.xlu0 0
        %511 = vperm.xlu0 %510, %v357
        %v512 = vpop.permute.xlu0 %511
        %515 = vset.pattern.permute.xlu0 0
        %516 = vperm.xlu0 %515, %v358
        %v517 = vpop.permute.xlu0 %516
        %vm519 = vcmask 261120
        %v521 = vsel %vm519, %v295, 0
        %v524 = vsel %vm519, %v296, 0
        %v527 = vsel %vm519, %v297, 0
        %v530 = vsel %vm519, %v298, 0
        %v533 = vsel %vm519, %v299, 0
        %v536 = vsel %vm519, %v300, 0
        %v539 = vsel %vm519, %v301, 0
        %v542 = vsel %vm519, %v302, 0
        %v545 = vsel %vm519, %v303, 0
        %v548 = vsel %vm519, %v304, 0
        %v551 = vsel %vm519, %v305, 0
        %v554 = vsel %vm519, %v306, 0
        %v557 = vsel %vm519, %v307, 0
        %v560 = vsel %vm519, %v308, 0
        %v563 = vsel %vm519, %v309, 0
        %v566 = vsel %vm519, %v310, 0
        %v569 = vsel %vm519, %v311, 0
        %v572 = vsel %vm519, %v312, 0
        %v575 = vsel %vm519, %v313, 0
        %v578 = vsel %vm519, %v314, 0
        %v581 = vsel %vm519, %v315, 0
        %v584 = vsel %vm519, %v316, 0
        %v587 = vsel %vm519, %v317, 0
        %v590 = vsel %vm519, %v318, 0
        %v593 = vsel %vm519, %v319, 0
        %v596 = vsel %vm519, %v320, 0
        %v599 = vsel %vm519, %v321, 0
        %v602 = vsel %vm519, %v322, 0
        %v605 = vsel %vm519, %v323, 0
        %v608 = vsel %vm519, %v324, 0
        %v611 = vsel %vm519, %v325, 0
        %v614 = vsel %vm519, %v326, 0
        %v617 = vsel %vm519, %v279, 0
        %v620 = vsel %vm519, %v280, 0
        %v623 = vsel %vm519, %v281, 0
        %v626 = vsel %vm519, %v282, 0
        %v629 = vsel %vm519, %v283, 0
        %v632 = vsel %vm519, %v284, 0
        %v635 = vsel %vm519, %v285, 0
        %v638 = vsel %vm519, %v286, 0
        %v641 = vsel %vm519, %v287, 0
        %v644 = vsel %vm519, %v288, 0
        %v647 = vsel %vm519, %v289, 0
        %v650 = vsel %vm519, %v290, 0
        %v653 = vsel %vm519, %v291, 0
        %v656 = vsel %vm519, %v292, 0
        %v659 = vsel %vm519, %v293, 0
        %v662 = vsel %vm519, %v294, 0
        %664 = vmatprep.subr.mxu0 0.0
        %665 = vmatpush1.xpose.msra.mxu0 %v662
        %666 = vmatprep.subr.mxu0 0.0
        %667 = vmatpush1.xpose.msra.mxu0 %v659
        %668 = vmatprep.subr.mxu0 0.0
        %669 = vmatpush1.xpose.msra.mxu0 %v656
        %670 = vmatprep.subr.mxu0 0.0
        %671 = vmatpush1.xpose.msra.mxu0 %v653
        %672 = vmatprep.subr.mxu0 0.0
        %673 = vmatpush1.xpose.msra.mxu0 %v650
        %674 = vmatprep.subr.mxu0 0.0
        %675 = vmatpush1.xpose.msra.mxu0 %v647
        %676 = vmatprep.subr.mxu0 0.0
        %677 = vmatpush1.xpose.msra.mxu0 %v644
        %678 = vmatprep.subr.mxu0 0.0
        %679 = vmatpush1.xpose.msra.mxu0 %v641
        %680 = vmatprep.subr.mxu0 0.0
        %681 = vmatpush1.xpose.msra.mxu0 %v638
        %682 = vmatprep.subr.mxu0 0.0
        %683 = vmatpush1.xpose.msra.mxu0 %v635
        %684 = vmatprep.subr.mxu0 0.0
        %685 = vmatpush1.xpose.msra.mxu0 %v632
        %686 = vmatprep.subr.mxu0 0.0
        %687 = vmatpush1.xpose.msra.mxu0 %v629
        %688 = vmatprep.subr.mxu0 0.0
        %689 = vmatpush1.xpose.msra.mxu0 %v626
        %690 = vmatprep.subr.mxu0 0.0
        %691 = vmatpush1.xpose.msra.mxu0 %v623
        %692 = vmatprep.subr.mxu0 0.0
        %693 = vmatpush1.xpose.msra.mxu0 %v620
        %694 = vmatprep.subr.mxu0 0.0
        %695 = vmatpush1.xpose.msra.mxu0 %v617
        %696 = vmatprep.subr.mxu0 0.0
        %697 = vmatpush2.xpose.msra.mxu0 0.0
        %698 = vmatprep.subr.mxu0 0.0
        %699 = vmatpush2.xpose.msra.mxu0 0.0
        %700 = vmatprep.subr.mxu0 0.0
        %701 = vmatpush2.xpose.msra.mxu0 0.0
        %702 = vmatprep.subr.mxu0 0.0
        %703 = vmatpush2.xpose.msra.mxu0 0.0
        %704 = vmatprep.subr.mxu0 0.0
        %705 = vmatpush2.xpose.msra.mxu0 0.0
        %706 = vmatprep.subr.mxu0 0.0
        %707 = vmatpush2.xpose.msra.mxu0 0.0
        %708 = vmatprep.subr.mxu0 0.0
        %709 = vmatpush2.xpose.msra.mxu0 0.0
        %710 = vmatprep.subr.mxu0 0.0
        %711 = vmatpush2.xpose.msra.mxu0 0.0
        %712 = vmatprep.subr.mxu0 0.0
        %713 = vmatpush2.xpose.msra.mxu0 0.0
        %714 = vmatprep.subr.mxu0 0.0
        %715 = vmatpush2.xpose.msra.mxu0 0.0
        %716 = vmatprep.subr.mxu0 0.0
        %717 = vmatpush2.xpose.msra.mxu0 0.0
        %718 = vmatprep.subr.mxu0 0.0
        %719 = vmatpush2.xpose.msra.mxu0 0.0
        %720 = vmatprep.subr.mxu0 0.0
        %721 = vmatpush2.xpose.msra.mxu0 0.0
        %722 = vmatprep.subr.mxu0 0.0
        %723 = vmatpush2.xpose.msra.mxu0 0.0
        %724 = vmatprep.subr.mxu0 0.0
        %725 = vmatpush2.xpose.msra.mxu0 0.0
        %726 = vmatprep.subr.mxu0 0.0
        %727 = vmatpush2.xpose.msra.mxu0 0.0
        %728 = vmatprep.mubr.f32.mxu0 0.0
        %729 = vmatmul.mubr.f32.gmra.mxu0 %v521
        %v730 = vpop.f32.mrf.mxu0
        %v731 = vadd.f32 %v362, %v730
        %v732 = vpop.f32.mrf.mxu0
        %733 = vmatprep.mubr.f32.mxu0 0.0
        %734 = vmatmul.mubr.f32.gmra.mxu0 %v524
        %v735 = vpop.f32.mrf.mxu0
        %v736 = vadd.f32 %v367, %v735
        %v737 = vpop.f32.mrf.mxu0
        %738 = vmatprep.mubr.f32.mxu0 0.0
        %739 = vmatmul.mubr.f32.gmra.mxu0 %v527
        %v740 = vpop.f32.mrf.mxu0
        %v741 = vadd.f32 %v372, %v740
        %v742 = vpop.f32.mrf.mxu0
        %743 = vmatprep.mubr.f32.mxu0 0.0
        %744 = vmatmul.mubr.f32.gmra.mxu0 %v530
        %v745 = vpop.f32.mrf.mxu0
        %v746 = vadd.f32 %v377, %v745
        %v747 = vpop.f32.mrf.mxu0
        %748 = vmatprep.mubr.f32.mxu0 0.0
        %749 = vmatmul.mubr.f32.gmra.mxu0 %v533
        %v750 = vpop.f32.mrf.mxu0
        %v751 = vadd.f32 %v382, %v750
        %v752 = vpop.f32.mrf.mxu0
        %753 = vmatprep.mubr.f32.mxu0 0.0
        %754 = vmatmul.mubr.f32.gmra.mxu0 %v536
        %v755 = vpop.f32.mrf.mxu0
        %v756 = vadd.f32 %v387, %v755
        %v757 = vpop.f32.mrf.mxu0
        %758 = vmatprep.mubr.f32.mxu0 0.0
        %759 = vmatmul.mubr.f32.gmra.mxu0 %v539
        %v760 = vpop.f32.mrf.mxu0
        %v761 = vadd.f32 %v392, %v760
        %v762 = vpop.f32.mrf.mxu0
        %763 = vmatprep.mubr.f32.mxu0 0.0
        %764 = vmatmul.mubr.f32.gmra.mxu0 %v542
        %v765 = vpop.f32.mrf.mxu0
        %v766 = vadd.f32 %v397, %v765
        %v767 = vpop.f32.mrf.mxu0
        %768 = vmatprep.mubr.f32.mxu0 0.0
        %769 = vmatmul.mubr.f32.gmra.mxu0 %v545
        %v770 = vpop.f32.mrf.mxu0
        %v771 = vadd.f32 %v402, %v770
        %v772 = vpop.f32.mrf.mxu0
        %773 = vmatprep.mubr.f32.mxu0 0.0
        %774 = vmatmul.mubr.f32.gmra.mxu0 %v548
        %v775 = vpop.f32.mrf.mxu0
        %v776 = vadd.f32 %v407, %v775
        %v777 = vpop.f32.mrf.mxu0
        %778 = vmatprep.mubr.f32.mxu0 0.0
        %779 = vmatmul.mubr.f32.gmra.mxu0 %v551
        %v780 = vpop.f32.mrf.mxu0
        %v781 = vadd.f32 %v412, %v780
        %v782 = vpop.f32.mrf.mxu0
        %783 = vmatprep.mubr.f32.mxu0 0.0
        %784 = vmatmul.mubr.f32.gmra.mxu0 %v554
        %v785 = vpop.f32.mrf.mxu0
        %v786 = vadd.f32 %v417, %v785
        %v787 = vpop.f32.mrf.mxu0
        %788 = vmatprep.mubr.f32.mxu0 0.0
        %789 = vmatmul.mubr.f32.gmra.mxu0 %v557
        %v790 = vpop.f32.mrf.mxu0
        %v791 = vadd.f32 %v422, %v790
        %v792 = vpop.f32.mrf.mxu0
        %793 = vmatprep.mubr.f32.mxu0 0.0
        %794 = vmatmul.mubr.f32.gmra.mxu0 %v560
        %v795 = vpop.f32.mrf.mxu0
        %v796 = vadd.f32 %v427, %v795
        %v797 = vpop.f32.mrf.mxu0
        %798 = vmatprep.mubr.f32.mxu0 0.0
        %799 = vmatmul.mubr.f32.gmra.mxu0 %v563
        %v800 = vpop.f32.mrf.mxu0
        %v801 = vadd.f32 %v432, %v800
        %v802 = vpop.f32.mrf.mxu0
        %803 = vmatprep.mubr.f32.mxu0 0.0
        %804 = vmatmul.mubr.f32.gmra.mxu0 %v566
        %v805 = vpop.f32.mrf.mxu0
        %v806 = vadd.f32 %v437, %v805
        %v807 = vpop.f32.mrf.mxu0
        %808 = vmatprep.mubr.f32.mxu0 0.0
        %809 = vmatmul.mubr.f32.gmra.mxu0 %v569
        %v810 = vpop.f32.mrf.mxu0
        %v811 = vadd.f32 %v442, %v810
        %v812 = vpop.f32.mrf.mxu0
        %813 = vmatprep.mubr.f32.mxu0 0.0
        %814 = vmatmul.mubr.f32.gmra.mxu0 %v572
        %v815 = vpop.f32.mrf.mxu0
        %v816 = vadd.f32 %v447, %v815
        %v817 = vpop.f32.mrf.mxu0
        %818 = vmatprep.mubr.f32.mxu0 0.0
        %819 = vmatmul.mubr.f32.gmra.mxu0 %v575
        %v820 = vpop.f32.mrf.mxu0
        %v821 = vadd.f32 %v452, %v820
        %v822 = vpop.f32.mrf.mxu0
        %823 = vmatprep.mubr.f32.mxu0 0.0
        %824 = vmatmul.mubr.f32.gmra.mxu0 %v578
        %v825 = vpop.f32.mrf.mxu0
        %v826 = vadd.f32 %v457, %v825
        %v827 = vpop.f32.mrf.mxu0
        %828 = vmatprep.mubr.f32.mxu0 0.0
        %829 = vmatmul.mubr.f32.gmra.mxu0 %v581
        %v830 = vpop.f32.mrf.mxu0
        %v831 = vadd.f32 %v462, %v830
        %v832 = vpop.f32.mrf.mxu0
        %833 = vmatprep.mubr.f32.mxu0 0.0
        %834 = vmatmul.mubr.f32.gmra.mxu0 %v584
        %v835 = vpop.f32.mrf.mxu0
        %v836 = vadd.f32 %v467, %v835
        %v837 = vpop.f32.mrf.mxu0
        %838 = vmatprep.mubr.f32.mxu0 0.0
        %839 = vmatmul.mubr.f32.gmra.mxu0 %v587
        %v840 = vpop.f32.mrf.mxu0
        %v841 = vadd.f32 %v472, %v840
        %v842 = vpop.f32.mrf.mxu0
        %843 = vmatprep.mubr.f32.mxu0 0.0
        %844 = vmatmul.mubr.f32.gmra.mxu0 %v590
        %v845 = vpop.f32.mrf.mxu0
        %v846 = vadd.f32 %v477, %v845
        %v847 = vpop.f32.mrf.mxu0
        %848 = vmatprep.mubr.f32.mxu0 0.0
        %849 = vmatmul.mubr.f32.gmra.mxu0 %v593
        %v850 = vpop.f32.mrf.mxu0
        %v851 = vadd.f32 %v482, %v850
        %v852 = vpop.f32.mrf.mxu0
        %853 = vmatprep.mubr.f32.mxu0 0.0
        %854 = vmatmul.mubr.f32.gmra.mxu0 %v596
        %v855 = vpop.f32.mrf.mxu0
        %v856 = vadd.f32 %v487, %v855
        %v857 = vpop.f32.mrf.mxu0
        %858 = vmatprep.mubr.f32.mxu0 0.0
        %859 = vmatmul.mubr.f32.gmra.mxu0 %v599
        %v860 = vpop.f32.mrf.mxu0
        %v861 = vadd.f32 %v492, %v860
        %v862 = vpop.f32.mrf.mxu0
        %863 = vmatprep.mubr.f32.mxu0 0.0
        %864 = vmatmul.mubr.f32.gmra.mxu0 %v602
        %v865 = vpop.f32.mrf.mxu0
        %v866 = vadd.f32 %v497, %v865
        %v867 = vpop.f32.mrf.mxu0
        %868 = vmatprep.mubr.f32.mxu0 0.0
        %869 = vmatmul.mubr.f32.gmra.mxu0 %v605
        %v870 = vpop.f32.mrf.mxu0
        %v871 = vadd.f32 %v502, %v870
        %v872 = vpop.f32.mrf.mxu0
        %873 = vmatprep.mubr.f32.mxu0 0.0
        %874 = vmatmul.mubr.f32.gmra.mxu0 %v608
        %v875 = vpop.f32.mrf.mxu0
        %v876 = vadd.f32 %v507, %v875
        %v877 = vpop.f32.mrf.mxu0
        %878 = vmatprep.mubr.f32.mxu0 0.0
        %879 = vmatmul.mubr.f32.gmra.mxu0 %v611
        %v880 = vpop.f32.mrf.mxu0
        %v881 = vadd.f32 %v512, %v880
        %v882 = vpop.f32.mrf.mxu0
        %883 = vmatprep.mubr.f32.mxu0 0.0
        %884 = vmatmul.mubr.f32.gmra.mxu0 %v614
        %v885 = vpop.f32.mrf.mxu0
        %v886 = vadd.f32 %v517, %v885
        %v887 = vpop.f32.mrf.mxu0
        %888 = vdwg.mxu0
        %v889 = vmax.f32 %v731, 0.0
        %v890 = vmax.f32 %v736, 0.0
        %v891 = vmax.f32 %v741, 0.0
        %v892 = vmax.f32 %v746, 0.0
        %v893 = vmax.f32 %v751, 0.0
        %v894 = vmax.f32 %v756, 0.0
        %v895 = vmax.f32 %v761, 0.0
        %v896 = vmax.f32 %v766, 0.0
        %v897 = vmax.f32 %v771, 0.0
        %v898 = vmax.f32 %v776, 0.0
        %v899 = vmax.f32 %v781, 0.0
        %v900 = vmax.f32 %v786, 0.0
        %v901 = vmax.f32 %v791, 0.0
        %v902 = vmax.f32 %v796, 0.0
        %v903 = vmax.f32 %v801, 0.0
        %v904 = vmax.f32 %v806, 0.0
        %v905 = vmax.f32 %v811, 0.0
        %v906 = vmax.f32 %v816, 0.0
        %v907 = vmax.f32 %v821, 0.0
        %v908 = vmax.f32 %v826, 0.0
        %v909 = vmax.f32 %v831, 0.0
        %v910 = vmax.f32 %v836, 0.0
        %v911 = vmax.f32 %v841, 0.0
        %v912 = vmax.f32 %v846, 0.0
        %v913 = vmax.f32 %v851, 0.0
        %v914 = vmax.f32 %v856, 0.0
        %v915 = vmax.f32 %v861, 0.0
        %v916 = vmax.f32 %v866, 0.0
        %v917 = vmax.f32 %v871, 0.0
        %v918 = vmax.f32 %v876, 0.0
        %v919 = vmax.f32 %v881, 0.0
        %v920 = vmax.f32 %v886, 0.0
        %v921 = vld [vmem:[%s3] sm:$0xff]
        %v922 = vld [vmem:[%s3 + $0x8] sm:$0xff]
        %v923 = vld [vmem:[%s3 + $0x10] sm:$0xff]
        %v924 = vld [vmem:[%s3 + $0x18] sm:$0xff]
        %v925 = vld [vmem:[%s3 + $0x20] sm:$0xff]
        %v926 = vld [vmem:[%s3 + $0x28] sm:$0xff]
        %v927 = vld [vmem:[%s3 + $0x30] sm:$0xff]
        %v928 = vld [vmem:[%s3 + $0x38] sm:$0xff]
        %v929 = vld [vmem:[%s3 + $0x40] sm:$0xff]
        %v930 = vld [vmem:[%s3 + $0x48] sm:$0xff]
        %v931 = vld [vmem:[%s3 + $0x50] sm:$0xff]
        %v932 = vld [vmem:[%s3 + $0x58] sm:$0xff]
        %v933 = vld [vmem:[%s3 + $0x60] sm:$0xff]
        %v934 = vld [vmem:[%s3 + $0x68] sm:$0xff]
        %v935 = vld [vmem:[%s3 + $0x70] sm:$0xff]
        %v936 = vld [vmem:[%s3 + $0x78] sm:$0xff]
        %v937 = vld [vmem:[%s3 + $0x80] sm:$0xff]
        %v938 = vld [vmem:[%s3 + $0x88] sm:$0xff]
        %v939 = vld [vmem:[%s3 + $0x90] sm:$0xff]
        %v940 = vld [vmem:[%s3 + $0x98] sm:$0xff]
        %v941 = vld [vmem:[%s3 + $0xa0] sm:$0xff]
        %v942 = vld [vmem:[%s3 + $0xa8] sm:$0xff]
        %v943 = vld [vmem:[%s3 + $0xb0] sm:$0xff]
        %v944 = vld [vmem:[%s3 + $0xb8] sm:$0xff]
        %v945 = vld [vmem:[%s3 + $0xc0] sm:$0xff]
        %v946 = vld [vmem:[%s3 + $0xc8] sm:$0xff]
        %v947 = vld [vmem:[%s3 + $0xd0] sm:$0xff]
        %v948 = vld [vmem:[%s3 + $0xd8] sm:$0xff]
        %v949 = vld [vmem:[%s3 + $0xe0] sm:$0xff]
        %v950 = vld [vmem:[%s3 + $0xe8] sm:$0xff]
        %v951 = vld [vmem:[%s3 + $0xf0] sm:$0xff]
        %v952 = vld [vmem:[%s3 + $0xf8] sm:$0xff]
        %v953 = vld [vmem:[%s3 + $0x100] sm:$0xff]
        %v954 = vld [vmem:[%s3 + $0x108] sm:$0xff]
        %v955 = vld [vmem:[%s3 + $0x110] sm:$0xff]
        %v956 = vld [vmem:[%s3 + $0x118] sm:$0xff]
        %v957 = vld [vmem:[%s3 + $0x120] sm:$0xff]
        %v958 = vld [vmem:[%s3 + $0x128] sm:$0xff]
        %v959 = vld [vmem:[%s3 + $0x130] sm:$0xff]
        %v960 = vld [vmem:[%s3 + $0x138] sm:$0xff]
        %v961 = vld [vmem:[%s3 + $0x140] sm:$0xff]
        %v962 = vld [vmem:[%s3 + $0x148] sm:$0xff]
        %v963 = vld [vmem:[%s3 + $0x150] sm:$0xff]
        %v964 = vld [vmem:[%s3 + $0x158] sm:$0xff]
        %v965 = vld [vmem:[%s3 + $0x160] sm:$0xff]
        %v966 = vld [vmem:[%s3 + $0x168] sm:$0xff]
        %v967 = vld [vmem:[%s3 + $0x170] sm:$0xff]
        %v968 = vld [vmem:[%s3 + $0x178] sm:$0xff]
        %v969 = vld [vmem:[%s3 + $0x180] sm:$0xff]
        %v970 = vld [vmem:[%s3 + $0x188] sm:$0xff]
        %v971 = vld [vmem:[%s3 + $0x190] sm:$0xff]
        %v972 = vld [vmem:[%s3 + $0x198] sm:$0xff]
        %v973 = vld [vmem:[%s3 + $0x1a0] sm:$0xff]
        %v974 = vld [vmem:[%s3 + $0x1a8] sm:$0xff]
        %v975 = vld [vmem:[%s3 + $0x1b0] sm:$0xff]
        %v976 = vld [vmem:[%s3 + $0x1b8] sm:$0xff]
        %v977 = vld [vmem:[%s3 + $0x1c0] sm:$0xff]
        %v978 = vld [vmem:[%s3 + $0x1c8] sm:$0xff]
        %v979 = vld [vmem:[%s3 + $0x1d0] sm:$0xff]
        %v980 = vld [vmem:[%s3 + $0x1d8] sm:$0xff]
        %v981 = vld [vmem:[%s3 + $0x1e0] sm:$0xff]
        %v982 = vld [vmem:[%s3 + $0x1e8] sm:$0xff]
        %v983 = vld [vmem:[%s3 + $0x1f0] sm:$0xff]
        %v984 = vld [vmem:[%s3 + $0x1f8] sm:$0xff]
        %v985 = vld [vmem:[%s4] sm:$0xff]
        %v986 = vld [vmem:[%s4 + $0x8] sm:$0xff]
        %v987 = vld [vmem:[%s4 + $0x10] sm:$0xff]
        %v988 = vld [vmem:[%s4 + $0x18] sm:$0xff]
        %v989 = vld [vmem:[%s4 + $0x20] sm:$0xff]
        %v990 = vld [vmem:[%s4 + $0x28] sm:$0xff]
        %v991 = vld [vmem:[%s4 + $0x30] sm:$0xff]
        %v992 = vld [vmem:[%s4 + $0x38] sm:$0xff]
        %v993 = vld [vmem:[%s4 + $0x40] sm:$0xff]
        %v994 = vld [vmem:[%s4 + $0x48] sm:$0xff]
        %v995 = vld [vmem:[%s4 + $0x50] sm:$0xff]
        %v996 = vld [vmem:[%s4 + $0x58] sm:$0xff]
        %v997 = vld [vmem:[%s4 + $0x60] sm:$0xff]
        %v998 = vld [vmem:[%s4 + $0x68] sm:$0xff]
        %v999 = vld [vmem:[%s4 + $0x70] sm:$0xff]
        %v1000 = vld [vmem:[%s4 + $0x78] sm:$0xff]
        %v1001 = vld [vmem:[%s4 + $0x80] sm:$0xff]
        %v1002 = vld [vmem:[%s4 + $0x88] sm:$0xff]
        %v1003 = vld [vmem:[%s4 + $0x90] sm:$0xff]
        %v1004 = vld [vmem:[%s4 + $0x98] sm:$0xff]
        %v1005 = vld [vmem:[%s4 + $0xa0] sm:$0xff]
        %v1006 = vld [vmem:[%s4 + $0xa8] sm:$0xff]
        %v1007 = vld [vmem:[%s4 + $0xb0] sm:$0xff]
        %v1008 = vld [vmem:[%s4 + $0xb8] sm:$0xff]
        %v1009 = vld [vmem:[%s4 + $0xc0] sm:$0xff]
        %v1010 = vld [vmem:[%s4 + $0xc8] sm:$0xff]
        %v1011 = vld [vmem:[%s4 + $0xd0] sm:$0xff]
        %v1012 = vld [vmem:[%s4 + $0xd8] sm:$0xff]
        %v1013 = vld [vmem:[%s4 + $0xe0] sm:$0xff]
        %v1014 = vld [vmem:[%s4 + $0xe8] sm:$0xff]
        %v1015 = vld [vmem:[%s4 + $0xf0] sm:$0xff]
        %v1016 = vld [vmem:[%s4 + $0xf8] sm:$0xff]
        %1018 = vset.pattern.permute.xlu0 0
        %1019 = vperm.xlu0 %1018, %v985
        %v1020 = vpop.permute.xlu0 %1019
        %1023 = vset.pattern.permute.xlu0 0
        %1024 = vperm.xlu0 %1023, %v986
        %v1025 = vpop.permute.xlu0 %1024
        %1028 = vset.pattern.permute.xlu0 0
        %1029 = vperm.xlu0 %1028, %v987
        %v1030 = vpop.permute.xlu0 %1029
        %1033 = vset.pattern.permute.xlu0 0
        %1034 = vperm.xlu0 %1033, %v988
        %v1035 = vpop.permute.xlu0 %1034
        %1038 = vset.pattern.permute.xlu0 0
        %1039 = vperm.xlu0 %1038, %v989
        %v1040 = vpop.permute.xlu0 %1039
        %1043 = vset.pattern.permute.xlu0 0
        %1044 = vperm.xlu0 %1043, %v990
        %v1045 = vpop.permute.xlu0 %1044
        %1048 = vset.pattern.permute.xlu0 0
        %1049 = vperm.xlu0 %1048, %v991
        %v1050 = vpop.permute.xlu0 %1049
        %1053 = vset.pattern.permute.xlu0 0
        %1054 = vperm.xlu0 %1053, %v992
        %v1055 = vpop.permute.xlu0 %1054
        %1058 = vset.pattern.permute.xlu0 0
        %1059 = vperm.xlu0 %1058, %v993
        %v1060 = vpop.permute.xlu0 %1059
        %1063 = vset.pattern.permute.xlu0 0
        %1064 = vperm.xlu0 %1063, %v994
        %v1065 = vpop.permute.xlu0 %1064
        %1068 = vset.pattern.permute.xlu0 0
        %1069 = vperm.xlu0 %1068, %v995
        %v1070 = vpop.permute.xlu0 %1069
        %1073 = vset.pattern.permute.xlu0 0
        %1074 = vperm.xlu0 %1073, %v996
        %v1075 = vpop.permute.xlu0 %1074
        %1078 = vset.pattern.permute.xlu0 0
        %1079 = vperm.xlu0 %1078, %v997
        %v1080 = vpop.permute.xlu0 %1079
        %1083 = vset.pattern.permute.xlu0 0
        %1084 = vperm.xlu0 %1083, %v998
        %v1085 = vpop.permute.xlu0 %1084
        %1088 = vset.pattern.permute.xlu0 0
        %1089 = vperm.xlu0 %1088, %v999
        %v1090 = vpop.permute.xlu0 %1089
        %1093 = vset.pattern.permute.xlu0 0
        %1094 = vperm.xlu0 %1093, %v1000
        %v1095 = vpop.permute.xlu0 %1094
        %1098 = vset.pattern.permute.xlu0 0
        %1099 = vperm.xlu0 %1098, %v1001
        %v1100 = vpop.permute.xlu0 %1099
        %1103 = vset.pattern.permute.xlu0 0
        %1104 = vperm.xlu0 %1103, %v1002
        %v1105 = vpop.permute.xlu0 %1104
        %1108 = vset.pattern.permute.xlu0 0
        %1109 = vperm.xlu0 %1108, %v1003
        %v1110 = vpop.permute.xlu0 %1109
        %1113 = vset.pattern.permute.xlu0 0
        %1114 = vperm.xlu0 %1113, %v1004
        %v1115 = vpop.permute.xlu0 %1114
        %1118 = vset.pattern.permute.xlu0 0
        %1119 = vperm.xlu0 %1118, %v1005
        %v1120 = vpop.permute.xlu0 %1119
        %1123 = vset.pattern.permute.xlu0 0
        %1124 = vperm.xlu0 %1123, %v1006
        %v1125 = vpop.permute.xlu0 %1124
        %1128 = vset.pattern.permute.xlu0 0
        %1129 = vperm.xlu0 %1128, %v1007
        %v1130 = vpop.permute.xlu0 %1129
        %1133 = vset.pattern.permute.xlu0 0
        %1134 = vperm.xlu0 %1133, %v1008
        %v1135 = vpop.permute.xlu0 %1134
        %1138 = vset.pattern.permute.xlu0 0
        %1139 = vperm.xlu0 %1138, %v1009
        %v1140 = vpop.permute.xlu0 %1139
        %1143 = vset.pattern.permute.xlu0 0
        %1144 = vperm.xlu0 %1143, %v1010
        %v1145 = vpop.permute.xlu0 %1144
        %1148 = vset.pattern.permute.xlu0 0
        %1149 = vperm.xlu0 %1148, %v1011
        %v1150 = vpop.permute.xlu0 %1149
        %1153 = vset.pattern.permute.xlu0 0
        %1154 = vperm.xlu0 %1153, %v1012
        %v1155 = vpop.permute.xlu0 %1154
        %1158 = vset.pattern.permute.xlu0 0
        %1159 = vperm.xlu0 %1158, %v1013
        %v1160 = vpop.permute.xlu0 %1159
        %1163 = vset.pattern.permute.xlu0 0
        %1164 = vperm.xlu0 %1163, %v1014
        %v1165 = vpop.permute.xlu0 %1164
        %1168 = vset.pattern.permute.xlu0 0
        %1169 = vperm.xlu0 %1168, %v1015
        %v1170 = vpop.permute.xlu0 %1169
        %1173 = vset.pattern.permute.xlu0 0
        %1174 = vperm.xlu0 %1173, %v1016
        %v1175 = vpop.permute.xlu0 %1174
        %1177 = vmatprep.subr.mxu0 0.0
        %1178 = vmatpush1.msra.mxu0 %v904
        %1179 = vmatprep.subr.mxu0 0.0
        %1180 = vmatpush1.msra.mxu0 %v903
        %1181 = vmatprep.subr.mxu0 0.0
        %1182 = vmatpush1.msra.mxu0 %v902
        %1183 = vmatprep.subr.mxu0 0.0
        %1184 = vmatpush1.msra.mxu0 %v901
        %1185 = vmatprep.subr.mxu0 0.0
        %1186 = vmatpush1.msra.mxu0 %v900
        %1187 = vmatprep.subr.mxu0 0.0
        %1188 = vmatpush1.msra.mxu0 %v899
        %1189 = vmatprep.subr.mxu0 0.0
        %1190 = vmatpush1.msra.mxu0 %v898
        %1191 = vmatprep.subr.mxu0 0.0
        %1192 = vmatpush1.msra.mxu0 %v897
        %1193 = vmatprep.subr.mxu0 0.0
        %1194 = vmatpush1.msra.mxu0 %v896
        %1195 = vmatprep.subr.mxu0 0.0
        %1196 = vmatpush1.msra.mxu0 %v895
        %1197 = vmatprep.subr.mxu0 0.0
        %1198 = vmatpush1.msra.mxu0 %v894
        %1199 = vmatprep.subr.mxu0 0.0
        %1200 = vmatpush1.msra.mxu0 %v893
        %1201 = vmatprep.subr.mxu0 0.0
        %1202 = vmatpush1.msra.mxu0 %v892
        %1203 = vmatprep.subr.mxu0 0.0
        %1204 = vmatpush1.msra.mxu0 %v891
        %1205 = vmatprep.subr.mxu0 0.0
        %1206 = vmatpush1.msra.mxu0 %v890
        %1207 = vmatprep.subr.mxu0 0.0
        %1208 = vmatpush1.msra.mxu0 %v889
        %1209 = vmatprep.subr.mxu0 0.0
        %1210 = vmatpush2.msra.mxu0 %v920
        %1211 = vmatprep.subr.mxu0 0.0
        %1212 = vmatpush2.msra.mxu0 %v919
        %1213 = vmatprep.subr.mxu0 0.0
        %1214 = vmatpush2.msra.mxu0 %v918
        %1215 = vmatprep.subr.mxu0 0.0
        %1216 = vmatpush2.msra.mxu0 %v917
        %1217 = vmatprep.subr.mxu0 0.0
        %1218 = vmatpush2.msra.mxu0 %v916
        %1219 = vmatprep.subr.mxu0 0.0
        %1220 = vmatpush2.msra.mxu0 %v915
        %1221 = vmatprep.subr.mxu0 0.0
        %1222 = vmatpush2.msra.mxu0 %v914
        %1223 = vmatprep.subr.mxu0 0.0
        %1224 = vmatpush2.msra.mxu0 %v913
        %1225 = vmatprep.subr.mxu0 0.0
        %1226 = vmatpush2.msra.mxu0 %v912
        %1227 = vmatprep.subr.mxu0 0.0
        %1228 = vmatpush2.msra.mxu0 %v911
        %1229 = vmatprep.subr.mxu0 0.0
        %1230 = vmatpush2.msra.mxu0 %v910
        %1231 = vmatprep.subr.mxu0 0.0
        %1232 = vmatpush2.msra.mxu0 %v909
        %1233 = vmatprep.subr.mxu0 0.0
        %1234 = vmatpush2.msra.mxu0 %v908
        %1235 = vmatprep.subr.mxu0 0.0
        %1236 = vmatpush2.msra.mxu0 %v907
        %1237 = vmatprep.subr.mxu0 0.0
        %1238 = vmatpush2.msra.mxu0 %v906
        %1239 = vmatprep.subr.mxu0 0.0
        %1240 = vmatpush2.msra.mxu0 %v905
        %1241 = vmatprep.mubr.f32.mxu0 %v922
        %1242 = vmatmul.mubr.f32.gmra.mxu0 %v921
        %v1243 = vpop.f32.mrf.mxu0
        %v1244 = vadd.f32 %v1020, %v1243
        %v1245 = vpop.f32.mrf.mxu0
        %1246 = vmatprep.mubr.f32.mxu0 %v924
        %1247 = vmatmul.mubr.f32.gmra.mxu0 %v923
        %v1248 = vpop.f32.mrf.mxu0
        %v1249 = vadd.f32 %v1025, %v1248
        %v1250 = vpop.f32.mrf.mxu0
        %1251 = vmatprep.mubr.f32.mxu0 %v926
        %1252 = vmatmul.mubr.f32.gmra.mxu0 %v925
        %v1253 = vpop.f32.mrf.mxu0
        %v1254 = vadd.f32 %v1030, %v1253
        %v1255 = vpop.f32.mrf.mxu0
        %1256 = vmatprep.mubr.f32.mxu0 %v928
        %1257 = vmatmul.mubr.f32.gmra.mxu0 %v927
        %v1258 = vpop.f32.mrf.mxu0
        %v1259 = vadd.f32 %v1035, %v1258
        %v1260 = vpop.f32.mrf.mxu0
        %1261 = vmatprep.mubr.f32.mxu0 %v930
        %1262 = vmatmul.mubr.f32.gmra.mxu0 %v929
        %v1263 = vpop.f32.mrf.mxu0
        %v1264 = vadd.f32 %v1040, %v1263
        %v1265 = vpop.f32.mrf.mxu0
        %1266 = vmatprep.mubr.f32.mxu0 %v932
        %1267 = vmatmul.mubr.f32.gmra.mxu0 %v931
        %v1268 = vpop.f32.mrf.mxu0
        %v1269 = vadd.f32 %v1045, %v1268
        %v1270 = vpop.f32.mrf.mxu0
        %1271 = vmatprep.mubr.f32.mxu0 %v934
        %1272 = vmatmul.mubr.f32.gmra.mxu0 %v933
        %v1273 = vpop.f32.mrf.mxu0
        %v1274 = vadd.f32 %v1050, %v1273
        %v1275 = vpop.f32.mrf.mxu0
        %1276 = vmatprep.mubr.f32.mxu0 %v936
        %1277 = vmatmul.mubr.f32.gmra.mxu0 %v935
        %v1278 = vpop.f32.mrf.mxu0
        %v1279 = vadd.f32 %v1055, %v1278
        %v1280 = vpop.f32.mrf.mxu0
        %1281 = vmatprep.mubr.f32.mxu0 %v938
        %1282 = vmatmul.mubr.f32.gmra.mxu0 %v937
        %v1283 = vpop.f32.mrf.mxu0
        %v1284 = vadd.f32 %v1060, %v1283
        %v1285 = vpop.f32.mrf.mxu0
        %1286 = vmatprep.mubr.f32.mxu0 %v940
        %1287 = vmatmul.mubr.f32.gmra.mxu0 %v939
        %v1288 = vpop.f32.mrf.mxu0
        %v1289 = vadd.f32 %v1065, %v1288
        %v1290 = vpop.f32.mrf.mxu0
        %1291 = vmatprep.mubr.f32.mxu0 %v942
        %1292 = vmatmul.mubr.f32.gmra.mxu0 %v941
        %v1293 = vpop.f32.mrf.mxu0
        %v1294 = vadd.f32 %v1070, %v1293
        %v1295 = vpop.f32.mrf.mxu0
        %1296 = vmatprep.mubr.f32.mxu0 %v944
        %1297 = vmatmul.mubr.f32.gmra.mxu0 %v943
        %v1298 = vpop.f32.mrf.mxu0
        %v1299 = vadd.f32 %v1075, %v1298
        %v1300 = vpop.f32.mrf.mxu0
        %1301 = vmatprep.mubr.f32.mxu0 %v946
        %1302 = vmatmul.mubr.f32.gmra.mxu0 %v945
        %v1303 = vpop.f32.mrf.mxu0
        %v1304 = vadd.f32 %v1080, %v1303
        %v1305 = vpop.f32.mrf.mxu0
        %1306 = vmatprep.mubr.f32.mxu0 %v948
        %1307 = vmatmul.mubr.f32.gmra.mxu0 %v947
        %v1308 = vpop.f32.mrf.mxu0
        %v1309 = vadd.f32 %v1085, %v1308
        %v1310 = vpop.f32.mrf.mxu0
        %1311 = vmatprep.mubr.f32.mxu0 %v950
        %1312 = vmatmul.mubr.f32.gmra.mxu0 %v949
        %v1313 = vpop.f32.mrf.mxu0
        %v1314 = vadd.f32 %v1090, %v1313
        %v1315 = vpop.f32.mrf.mxu0
        %1316 = vmatprep.mubr.f32.mxu0 %v952
        %1317 = vmatmul.mubr.f32.gmra.mxu0 %v951
        %v1318 = vpop.f32.mrf.mxu0
        %v1319 = vadd.f32 %v1095, %v1318
        %v1320 = vpop.f32.mrf.mxu0
        %1321 = vmatprep.mubr.f32.mxu0 %v954
        %1322 = vmatmul.mubr.f32.gmra.mxu0 %v953
        %v1323 = vpop.f32.mrf.mxu0
        %v1324 = vadd.f32 %v1100, %v1323
        %v1325 = vpop.f32.mrf.mxu0
        %1326 = vmatprep.mubr.f32.mxu0 %v956
        %1327 = vmatmul.mubr.f32.gmra.mxu0 %v955
        %v1328 = vpop.f32.mrf.mxu0
        %v1329 = vadd.f32 %v1105, %v1328
        %v1330 = vpop.f32.mrf.mxu0
        %1331 = vmatprep.mubr.f32.mxu0 %v958
        %1332 = vmatmul.mubr.f32.gmra.mxu0 %v957
        %v1333 = vpop.f32.mrf.mxu0
        %v1334 = vadd.f32 %v1110, %v1333
        %v1335 = vpop.f32.mrf.mxu0
        %1336 = vmatprep.mubr.f32.mxu0 %v960
        %1337 = vmatmul.mubr.f32.gmra.mxu0 %v959
        %v1338 = vpop.f32.mrf.mxu0
        %v1339 = vadd.f32 %v1115, %v1338
        %v1340 = vpop.f32.mrf.mxu0
        %1341 = vmatprep.mubr.f32.mxu0 %v962
        %1342 = vmatmul.mubr.f32.gmra.mxu0 %v961
        %v1343 = vpop.f32.mrf.mxu0
        %v1344 = vadd.f32 %v1120, %v1343
        %v1345 = vpop.f32.mrf.mxu0
        %1346 = vmatprep.mubr.f32.mxu0 %v964
        %1347 = vmatmul.mubr.f32.gmra.mxu0 %v963
        %v1348 = vpop.f32.mrf.mxu0
        %v1349 = vadd.f32 %v1125, %v1348
        %v1350 = vpop.f32.mrf.mxu0
        %1351 = vmatprep.mubr.f32.mxu0 %v966
        %1352 = vmatmul.mubr.f32.gmra.mxu0 %v965
        %v1353 = vpop.f32.mrf.mxu0
        %v1354 = vadd.f32 %v1130, %v1353
        %v1355 = vpop.f32.mrf.mxu0
        %1356 = vmatprep.mubr.f32.mxu0 %v968
        %1357 = vmatmul.mubr.f32.gmra.mxu0 %v967
        %v1358 = vpop.f32.mrf.mxu0
        %v1359 = vadd.f32 %v1135, %v1358
        %v1360 = vpop.f32.mrf.mxu0
        %1361 = vmatprep.mubr.f32.mxu0 %v970
        %1362 = vmatmul.mubr.f32.gmra.mxu0 %v969
        %v1363 = vpop.f32.mrf.mxu0
        %v1364 = vadd.f32 %v1140, %v1363
        %v1365 = vpop.f32.mrf.mxu0
        %1366 = vmatprep.mubr.f32.mxu0 %v972
        %1367 = vmatmul.mubr.f32.gmra.mxu0 %v971
        %v1368 = vpop.f32.mrf.mxu0
        %v1369 = vadd.f32 %v1145, %v1368
        %v1370 = vpop.f32.mrf.mxu0
        %1371 = vmatprep.mubr.f32.mxu0 %v974
        %1372 = vmatmul.mubr.f32.gmra.mxu0 %v973
        %v1373 = vpop.f32.mrf.mxu0
        %v1374 = vadd.f32 %v1150, %v1373
        %v1375 = vpop.f32.mrf.mxu0
        %1376 = vmatprep.mubr.f32.mxu0 %v976
        %1377 = vmatmul.mubr.f32.gmra.mxu0 %v975
        %v1378 = vpop.f32.mrf.mxu0
        %v1379 = vadd.f32 %v1155, %v1378
        %v1380 = vpop.f32.mrf.mxu0
        %1381 = vmatprep.mubr.f32.mxu0 %v978
        %1382 = vmatmul.mubr.f32.gmra.mxu0 %v977
        %v1383 = vpop.f32.mrf.mxu0
        %v1384 = vadd.f32 %v1160, %v1383
        %v1385 = vpop.f32.mrf.mxu0
        %1386 = vmatprep.mubr.f32.mxu0 %v980
        %1387 = vmatmul.mubr.f32.gmra.mxu0 %v979
        %v1388 = vpop.f32.mrf.mxu0
        %v1389 = vadd.f32 %v1165, %v1388
        %v1390 = vpop.f32.mrf.mxu0
        %1391 = vmatprep.mubr.f32.mxu0 %v982
        %1392 = vmatmul.mubr.f32.gmra.mxu0 %v981
        %v1393 = vpop.f32.mrf.mxu0
        %v1394 = vadd.f32 %v1170, %v1393
        %v1395 = vpop.f32.mrf.mxu0
        %1396 = vmatprep.mubr.f32.mxu0 %v984
        %1397 = vmatmul.mubr.f32.gmra.mxu0 %v983
        %v1398 = vpop.f32.mrf.mxu0
        %v1399 = vadd.f32 %v1175, %v1398
        %v1400 = vpop.f32.mrf.mxu0
        %1401 = vdwg.mxu0
        %v1402 = vmax.f32 %v1244, 0.0
        %v1403 = vmax.f32 %v1249, 0.0
        %v1404 = vmax.f32 %v1254, 0.0
        %v1405 = vmax.f32 %v1259, 0.0
        %v1406 = vmax.f32 %v1264, 0.0
        %v1407 = vmax.f32 %v1269, 0.0
        %v1408 = vmax.f32 %v1274, 0.0
        %v1409 = vmax.f32 %v1279, 0.0
        %v1410 = vmax.f32 %v1284, 0.0
        %v1411 = vmax.f32 %v1289, 0.0
        %v1412 = vmax.f32 %v1294, 0.0
        %v1413 = vmax.f32 %v1299, 0.0
        %v1414 = vmax.f32 %v1304, 0.0
        %v1415 = vmax.f32 %v1309, 0.0
        %v1416 = vmax.f32 %v1314, 0.0
        %v1417 = vmax.f32 %v1319, 0.0
        %v1418 = vmax.f32 %v1324, 0.0
        %v1419 = vmax.f32 %v1329, 0.0
        %v1420 = vmax.f32 %v1334, 0.0
        %v1421 = vmax.f32 %v1339, 0.0
        %v1422 = vmax.f32 %v1344, 0.0
        %v1423 = vmax.f32 %v1349, 0.0
        %v1424 = vmax.f32 %v1354, 0.0
        %v1425 = vmax.f32 %v1359, 0.0
        %v1426 = vmax.f32 %v1364, 0.0
        %v1427 = vmax.f32 %v1369, 0.0
        %v1428 = vmax.f32 %v1374, 0.0
        %v1429 = vmax.f32 %v1379, 0.0
        %v1430 = vmax.f32 %v1384, 0.0
        %v1431 = vmax.f32 %v1389, 0.0
        %v1432 = vmax.f32 %v1394, 0.0
        %v1433 = vmax.f32 %v1399, 0.0
        %v1434 = vld [vmem:[%s5] sm:$0xff]
        %v1435 = vld [vmem:[%s5 + $0x8] sm:$0xff]
        %v1436 = vld [vmem:[%s5 + $0x10] sm:$0xff]
        %v1437 = vld [vmem:[%s5 + $0x18] sm:$0xff]
        %v1438 = vld [vmem:[%s5 + $0x20] sm:$0xff]
        %v1439 = vld [vmem:[%s5 + $0x28] sm:$0xff]
        %v1440 = vld [vmem:[%s5 + $0x30] sm:$0xff]
        %v1441 = vld [vmem:[%s5 + $0x38] sm:$0xff]
        %v1442 = vld [vmem:[%s5 + $0x40] sm:$0xff]
        %v1443 = vld [vmem:[%s5 + $0x48] sm:$0xff]
        %v1444 = vld [vmem:[%s5 + $0x50] sm:$0xff]
        %v1445 = vld [vmem:[%s5 + $0x58] sm:$0xff]
        %v1446 = vld [vmem:[%s5 + $0x60] sm:$0xff]
        %v1447 = vld [vmem:[%s5 + $0x68] sm:$0xff]
        %v1448 = vld [vmem:[%s5 + $0x70] sm:$0xff]
        %v1449 = vld [vmem:[%s5 + $0x78] sm:$0xff]
        %v1450 = vld [vmem:[%s5 + $0x80] sm:$0xff]
        %v1451 = vld [vmem:[%s5 + $0x88] sm:$0xff]
        %v1452 = vld [vmem:[%s5 + $0x90] sm:$0xff]
        %v1453 = vld [vmem:[%s5 + $0x98] sm:$0xff]
        %v1454 = vld [vmem:[%s5 + $0xa0] sm:$0xff]
        %v1455 = vld [vmem:[%s5 + $0xa8] sm:$0xff]
        %v1456 = vld [vmem:[%s5 + $0xb0] sm:$0xff]
        %v1457 = vld [vmem:[%s5 + $0xb8] sm:$0xff]
        %v1458 = vld [vmem:[%s5 + $0xc0] sm:$0xff]
        %v1459 = vld [vmem:[%s5 + $0xc8] sm:$0xff]
        %v1460 = vld [vmem:[%s5 + $0xd0] sm:$0xff]
        %v1461 = vld [vmem:[%s5 + $0xd8] sm:$0xff]
        %v1462 = vld [vmem:[%s5 + $0xe0] sm:$0xff]
        %v1463 = vld [vmem:[%s5 + $0xe8] sm:$0xff]
        %v1464 = vld [vmem:[%s5 + $0xf0] sm:$0xff]
        %v1465 = vld [vmem:[%s5 + $0xf8] sm:$0xff]
        %1467 = vset.pattern.permute.xlu0 0
        %1468 = vperm.xlu0 %1467, %v1434
        %v1469 = vpop.permute.xlu0 %1468
        %1472 = vset.pattern.permute.xlu0 0
        %1473 = vperm.xlu0 %1472, %v1435
        %v1474 = vpop.permute.xlu0 %1473
        %1477 = vset.pattern.permute.xlu0 0
        %1478 = vperm.xlu0 %1477, %v1436
        %v1479 = vpop.permute.xlu0 %1478
        %1482 = vset.pattern.permute.xlu0 0
        %1483 = vperm.xlu0 %1482, %v1437
        %v1484 = vpop.permute.xlu0 %1483
        %1487 = vset.pattern.permute.xlu0 0
        %1488 = vperm.xlu0 %1487, %v1438
        %v1489 = vpop.permute.xlu0 %1488
        %1492 = vset.pattern.permute.xlu0 0
        %1493 = vperm.xlu0 %1492, %v1439
        %v1494 = vpop.permute.xlu0 %1493
        %1497 = vset.pattern.permute.xlu0 0
        %1498 = vperm.xlu0 %1497, %v1440
        %v1499 = vpop.permute.xlu0 %1498
        %1502 = vset.pattern.permute.xlu0 0
        %1503 = vperm.xlu0 %1502, %v1441
        %v1504 = vpop.permute.xlu0 %1503
        %1507 = vset.pattern.permute.xlu0 0
        %1508 = vperm.xlu0 %1507, %v1442
        %v1509 = vpop.permute.xlu0 %1508
        %1512 = vset.pattern.permute.xlu0 0
        %1513 = vperm.xlu0 %1512, %v1443
        %v1514 = vpop.permute.xlu0 %1513
        %1517 = vset.pattern.permute.xlu0 0
        %1518 = vperm.xlu0 %1517, %v1444
        %v1519 = vpop.permute.xlu0 %1518
        %1522 = vset.pattern.permute.xlu0 0
        %1523 = vperm.xlu0 %1522, %v1445
        %v1524 = vpop.permute.xlu0 %1523
        %1527 = vset.pattern.permute.xlu0 0
        %1528 = vperm.xlu0 %1527, %v1446
        %v1529 = vpop.permute.xlu0 %1528
        %1532 = vset.pattern.permute.xlu0 0
        %1533 = vperm.xlu0 %1532, %v1447
        %v1534 = vpop.permute.xlu0 %1533
        %1537 = vset.pattern.permute.xlu0 0
        %1538 = vperm.xlu0 %1537, %v1448
        %v1539 = vpop.permute.xlu0 %1538
        %1542 = vset.pattern.permute.xlu0 0
        %1543 = vperm.xlu0 %1542, %v1449
        %v1544 = vpop.permute.xlu0 %1543
        %1547 = vset.pattern.permute.xlu0 0
        %1548 = vperm.xlu0 %1547, %v1450
        %v1549 = vpop.permute.xlu0 %1548
        %1552 = vset.pattern.permute.xlu0 0
        %1553 = vperm.xlu0 %1552, %v1451
        %v1554 = vpop.permute.xlu0 %1553
        %1557 = vset.pattern.permute.xlu0 0
        %1558 = vperm.xlu0 %1557, %v1452
        %v1559 = vpop.permute.xlu0 %1558
        %1562 = vset.pattern.permute.xlu0 0
        %1563 = vperm.xlu0 %1562, %v1453
        %v1564 = vpop.permute.xlu0 %1563
        %1567 = vset.pattern.permute.xlu0 0
        %1568 = vperm.xlu0 %1567, %v1454
        %v1569 = vpop.permute.xlu0 %1568
        %1572 = vset.pattern.permute.xlu0 0
        %1573 = vperm.xlu0 %1572, %v1455
        %v1574 = vpop.permute.xlu0 %1573
        %1577 = vset.pattern.permute.xlu0 0
        %1578 = vperm.xlu0 %1577, %v1456
        %v1579 = vpop.permute.xlu0 %1578
        %1582 = vset.pattern.permute.xlu0 0
        %1583 = vperm.xlu0 %1582, %v1457
        %v1584 = vpop.permute.xlu0 %1583
        %1587 = vset.pattern.permute.xlu0 0
        %1588 = vperm.xlu0 %1587, %v1458
        %v1589 = vpop.permute.xlu0 %1588
        %1592 = vset.pattern.permute.xlu0 0
        %1593 = vperm.xlu0 %1592, %v1459
        %v1594 = vpop.permute.xlu0 %1593
        %1597 = vset.pattern.permute.xlu0 0
        %1598 = vperm.xlu0 %1597, %v1460
        %v1599 = vpop.permute.xlu0 %1598
        %1602 = vset.pattern.permute.xlu0 0
        %1603 = vperm.xlu0 %1602, %v1461
        %v1604 = vpop.permute.xlu0 %1603
        %1607 = vset.pattern.permute.xlu0 0
        %1608 = vperm.xlu0 %1607, %v1462
        %v1609 = vpop.permute.xlu0 %1608
        %1612 = vset.pattern.permute.xlu0 0
        %1613 = vperm.xlu0 %1612, %v1463
        %v1614 = vpop.permute.xlu0 %1613
        %1617 = vset.pattern.permute.xlu0 0
        %1618 = vperm.xlu0 %1617, %v1464
        %v1619 = vpop.permute.xlu0 %1618
        %1622 = vset.pattern.permute.xlu0 0
        %1623 = vperm.xlu0 %1622, %v1465
        %v1624 = vpop.permute.xlu0 %1623
        %v1626 = vmul.f32 %v1402, %v1469
        %v1627 = vmul.f32 %v1403, %v1474
        %v1628 = vmul.f32 %v1404, %v1479
        %v1629 = vmul.f32 %v1405, %v1484
        %v1630 = vmul.f32 %v1406, %v1489
        %v1631 = vmul.f32 %v1407, %v1494
        %v1632 = vmul.f32 %v1408, %v1499
        %v1633 = vmul.f32 %v1409, %v1504
        %v1634 = vmul.f32 %v1410, %v1509
        %v1635 = vmul.f32 %v1411, %v1514
        %v1636 = vmul.f32 %v1412, %v1519
        %v1637 = vmul.f32 %v1413, %v1524
        %v1638 = vmul.f32 %v1414, %v1529
        %v1639 = vmul.f32 %v1415, %v1534
        %v1640 = vmul.f32 %v1416, %v1539
        %v1641 = vmul.f32 %v1417, %v1544
        %v1642 = vmul.f32 %v1418, %v1549
        %v1643 = vmul.f32 %v1419, %v1554
        %v1644 = vmul.f32 %v1420, %v1559
        %v1645 = vmul.f32 %v1421, %v1564
        %v1646 = vmul.f32 %v1422, %v1569
        %v1647 = vmul.f32 %v1423, %v1574
        %v1648 = vmul.f32 %v1424, %v1579
        %v1649 = vmul.f32 %v1425, %v1584
        %v1650 = vmul.f32 %v1426, %v1589
        %v1651 = vmul.f32 %v1427, %v1594
        %v1652 = vmul.f32 %v1428, %v1599
        %v1653 = vmul.f32 %v1429, %v1604
        %v1654 = vmul.f32 %v1430, %v1609
        %v1655 = vmul.f32 %v1431, %v1614
        %v1656 = vmul.f32 %v1432, %v1619
        %v1657 = vmul.f32 %v1433, %v1624
        %v1658 = vadd.f32 %v1626, %v1627
        %v1659 = vadd.f32 %v1658, %v1628
        %v1660 = vadd.f32 %v1659, %v1629
        %v1661 = vadd.f32 %v1660, %v1630
        %v1662 = vadd.f32 %v1661, %v1631
        %v1663 = vadd.f32 %v1662, %v1632
        %v1664 = vadd.f32 %v1663, %v1633
        %v1665 = vadd.f32 %v1664, %v1634
        %v1666 = vadd.f32 %v1665, %v1635
        %v1667 = vadd.f32 %v1666, %v1636
        %v1668 = vadd.f32 %v1667, %v1637
        %v1669 = vadd.f32 %v1668, %v1638
        %v1670 = vadd.f32 %v1669, %v1639
        %v1671 = vadd.f32 %v1670, %v1640
        %v1672 = vadd.f32 %v1671, %v1641
        %v1673 = vadd.f32 %v1672, %v1642
        %v1674 = vadd.f32 %v1673, %v1643
        %v1675 = vadd.f32 %v1674, %v1644
        %v1676 = vadd.f32 %v1675, %v1645
        %v1677 = vadd.f32 %v1676, %v1646
        %v1678 = vadd.f32 %v1677, %v1647
        %v1679 = vadd.f32 %v1678, %v1648
        %v1680 = vadd.f32 %v1679, %v1649
        %v1681 = vadd.f32 %v1680, %v1650
        %v1682 = vadd.f32 %v1681, %v1651
        %v1683 = vadd.f32 %v1682, %v1652
        %v1684 = vadd.f32 %v1683, %v1653
        %v1685 = vadd.f32 %v1684, %v1654
        %v1686 = vadd.f32 %v1685, %v1655
        %v1687 = vadd.f32 %v1686, %v1656
        %v1688 = vadd.f32 %v1687, %v1657
        %v1689 = vrot.slane %v1688, 4
        %v1690 = vadd.f32 %v1688, %v1689
        %v1691 = vrot.slane %v1690, 2
        %v1692 = vadd.f32 %v1690, %v1691
        %v1693 = vrot.slane %v1692, 1
        %v1694 = vadd.f32 %v1692, %v1693
        %s1695 = sld [smem:[#allocation2]]
        %v1696 = vstv %s1695
        %v1697 = vadd.f32 %v1694, %v1696
        %1698 = vst [vmem:[%s272] sm:$0x1] %v1697
        %s1699 = sand.u32 %s182, 1
        %s1700 = scalar_lea.sflag [#allocation4], %s1699
        %s1701 = sand.u32 %s182, 1
        %s1702 = scalar_lea.vmem [#allocation3], %s1701
        // Predicated region
        $region49: #{_forward_impl.1} parent=47 // pred_check
          %p1703 = pneg %p192
        $region50: #{_forward_impl.1} parent=47 // pred_check_branch
          %1705 = sbr.rel (%p1703) target = $region52
        $region51: #{_forward_impl.1} parent=47 // pred_region
          %s1707 = ssub.s32 16, 16
          %1708 = vsyncadd %s1700, %s1707
          %s1709 = smul.addr %s22, 16
          %s1710 = scalar_lea.hbm %s7, %s1709
          %s1712 = sshll.u32 %s1702, 4
          %s1713 = int_to_ptr.vmem [resolvable:$true] %s1712
          %1715 = dma.vmem_to_hbm [thread:$0]  %s1713, 16, %s1710, %s1700
        $region52: #{_forward_impl.1} parent=47 // pred_fallthru
          _
      $region48: #{_forward_impl.1} parent=5 // pred_fallthru
        _
      %p1716 = scmp.le.s32.totalorder 2, %s17
      // Predicated region
      $region53: #{_forward_impl.1} parent=5 // pred_check
        %p1717 = pneg %p1716
      $region54: #{_forward_impl.1} parent=5 // pred_check_branch
        %1719 = sbr.rel (%p1717) target = $region56
      $region55: #{_forward_impl.1} parent=5 // pred_region
        %s1720 = ssub.s32 %s17, 2
        // Predicated region
        $region57: #{_forward_impl.1} parent=55 // pred_check
          %p1721 = pneg %p198
        $region58: #{_forward_impl.1} parent=55 // pred_check_branch
          %1723 = sbr.rel (%p1721) target = $region60
        $region59: #{_forward_impl.1} parent=55 // pred_region
          %s1724 = sand.u32 %s183, 1
          %s1725 = scalar_lea.sflag [#allocation4], %s1724
          %s1726 = sand.u32 %s183, 1
          %s1727 = scalar_lea.vmem [#allocation3], %s1726
          %1728 = dma.done %s1725, 16
        $region60: #{_forward_impl.1} parent=55 // pred_fallthru
          _
      $region56: #{_forward_impl.1} parent=5 // pred_fallthru
        _
    $region6: #{_forward_impl.1} parent=1 // loop_footer
      %s21 = sadd.s32 1, %s17
    $region7: #{_forward_impl.1} parent=1 // loop_footer_branch
      %16 = sbr.rel target = $region3
    $region8: #{_forward_impl.1} parent=1 // loop_exit
      _
    %1729 = vsyncpa [#allocation4], 1
    %s1730 = scalar_lea.sflag [#allocation4], 1
    %1731 = vsyncpa %s1730, 1

</llo_original>
